<compile_context>
chip_gen: v6e
topology: v6e:2x2x1
jax: 0.10.0
libtpu: 0.0.40
codegen_flags: <defaults>
</compile_context>

<pallas_src>
import functools

import jax
import jax.numpy as jnp
from jax import lax
from jax.experimental import pallas as pl
from jax.experimental.pallas import tpu as pltpu


def _wdsr_kernel(x_ref, m_ref, w1_ref, b1_ref, w2_ref, b2_ref, o_ref, *, W, scaling):
    # x_ref : (1, Ci8, L)      input image, channels on sublanes, L = H*W on lanes
    # m_ref : (8, L)           f32 border masks, one row per non-center tap
    # w1_ref: (9, Ch8, Ci8)    bf16 conv1 weights, tap-major
    # b1_ref: (Ch8, 1)         f32
    # w2_ref: (9, Co8, Ch8)    bf16 conv2 weights, tap-major
    # b2_ref: (Co8, 1)         f32
    # o_ref : (1, Co8, L)      f32
    x = x_ref[0]                                   # (Ci8, L) f32
    masks = m_ref[...]                             # (8, L)  f32
    L = x.shape[-1]

    # Static tap table: (tap_index, lane shift, mask row or None for center).
    taps = []
    mrow = 0
    for ti in range(3):
        for tj in range(3):
            dh, dw = ti - 1, tj - 1
            if dh == 0 and dw == 0:
                taps.append((ti * 3 + tj, 0, None))
            else:
                taps.append((ti * 3 + tj, (-(dh * W + dw)) % L, mrow))
                mrow += 1

    def shift_lanes(a, shift):
        if shift == 0:
            return a
        if a.shape[-1] % 128 == 0:
            return pltpu.roll(a, shift, axis=1)    # XLU rotate
        return jnp.roll(a, shift, axis=1)          # safe fallback (odd lane widths)

    def conv3x3(act, w_ref):
        # act: (Cin8, L) f32; w_ref: (9, Cout8, Cin8) bf16 -> (Cout8, L) f32.
        out_ch = w_ref.shape[1]
        acc = jnp.zeros((out_ch, L), jnp.float32)
        for t, shift, row in taps:
            r = shift_lanes(act, shift)
            if row is not None:
                # zero-fill the lanes whose source lies outside the image
                # (PyTorch padding=1 semantics), f32 VPU multiply.
                r = r * masks[row:row + 1, :]
            acc = acc + jnp.dot(w_ref[t], r.astype(jnp.bfloat16),
                                preferred_element_type=jnp.float32)
        return acc

    h = jnp.maximum(conv3x3(x, w1_ref) + b1_ref[...], 0.0)   # conv1 + bias + ReLU
    y = conv3x3(h, w2_ref) + b2_ref[...]                      # conv2 + bias
    o_ref[0] = (x + jnp.float32(scaling) * y).astype(o_ref.dtype)


def _round_up(v, m):
    return (v + m - 1) // m * m


def wdsr_a_res_block(x_nchw, w1, b1, w2, b2, scaling=1.0):
    """x: (N, Cin, H, W) f32. w1: (Chid, Cin, 3, 3) OIHW, w2: (Cout, Chid, 3, 3).
    Returns x + scaling * conv2(relu(conv1(x))), matching PyTorch (padding=1)."""
    N, Cin, H, W = x_nchw.shape
    Chid, Cout = w1.shape[0], w2.shape[0]
    assert w1.shape == (Chid, Cin, 3, 3) and w2.shape == (Cout, Chid, 3, 3)
    assert Cout == Cin, "residual add requires out_channels == in_channels"
    HW = H * W

    Ci8 = _round_up(Cin, 8)
    Ch8 = _round_up(Chid, 8)
    Co8 = _round_up(Cout, 8)

    # NCHW -> (N, C, H*W): metadata-only reshape; zero-pad channels to sublane multiple.
    x_flat = x_nchw.astype(jnp.float32).reshape(N, Cin, HW)
    if Ci8 != Cin:
        x_flat = jnp.pad(x_flat, ((0, 0), (0, Ci8 - Cin), (0, 0)))

    def pack_w(w, o8, i8):
        # OIHW -> (9, O8, I8) bf16, tap index = ti*3 + tj (matches kernel tap order).
        o, i = w.shape[0], w.shape[1]
        wt = jnp.transpose(w.astype(jnp.float32), (2, 3, 0, 1)).reshape(9, o, i)
        wt = jnp.pad(wt, ((0, 0), (0, o8 - o), (0, i8 - i)))
        return wt.astype(jnp.bfloat16)                       # bf16 MXU operands

    w1_p = pack_w(w1, Ch8, Ci8)                              # (9, Ch8, Ci8)
    w2_p = pack_w(w2, Co8, Ch8)                              # (9, Co8, Ch8)
    b1_p = jnp.pad(b1.astype(jnp.float32), (0, Ch8 - Chid)).reshape(Ch8, 1)
    b2_p = jnp.pad(b2.astype(jnp.float32), (0, Co8 - Cout)).reshape(Co8, 1)

    # Host-precomputed border masks (same tap order as the kernel, center skipped).
    # Replaces the in-kernel iota + integer divide.
    ii = jnp.repeat(jnp.arange(H, dtype=jnp.int32), W)       # row index per lane
    jj = jnp.tile(jnp.arange(W, dtype=jnp.int32), H)         # col index per lane
    rows = []
    for ti in range(3):
        for tj in range(3):
            dh, dw = ti - 1, tj - 1
            if dh == 0 and dw == 0:
                continue
            valid = jnp.ones((HW,), jnp.bool_)
            if dh < 0:
                valid = valid & (ii >= -dh)
            if dh > 0:
                valid = valid & (ii < H - dh)
            if dw < 0:
                valid = valid & (jj >= -dw)
            if dw > 0:
                valid = valid & (jj < W - dw)
            rows.append(valid)
    masks = jnp.stack(rows, axis=0).astype(jnp.float32)      # (8, HW)

    # Explicit VMEM budget: double-buffered I/O blocks + masks + weights/bias +
    # f32 accumulators + per-tap temporaries, with 2x slack (capped at 64 MiB so
    # it is valid on v7x as well).
    est = (2 * Ci8 * HW * 4 + 2 * Co8 * HW * 4 + 2 * 8 * HW * 4
           + 2 * 9 * (Ch8 * Ci8 + Co8 * Ch8) * 2 + 2 * (Ch8 + Co8) * 4
           + (Ch8 + Co8) * HW * 4 + max(Ci8, Ch8) * HW * 6)
    vmem_limit = int(min(max(2 * est, 16 * 1024 * 1024), 64 * 1024 * 1024))

    kernel = functools.partial(_wdsr_kernel, W=W, scaling=float(scaling))

    out_flat = pl.pallas_call(
        kernel,
        out_shape=jax.ShapeDtypeStruct((N, Co8, HW), jnp.float32),
        grid_spec=pltpu.PrefetchScalarGridSpec(
            num_scalar_prefetch=0,
            grid=(N,),                                       # batch on the grid
            in_specs=[
                pl.BlockSpec((1, Ci8, HW), lambda n: (n, 0, 0)),
                pl.BlockSpec((8, HW), lambda n: (0, 0)),
                pl.BlockSpec((9, Ch8, Ci8), lambda n: (0, 0, 0)),
                pl.BlockSpec((Ch8, 1), lambda n: (0, 0)),
                pl.BlockSpec((9, Co8, Ch8), lambda n: (0, 0, 0)),
                pl.BlockSpec((Co8, 1), lambda n: (0, 0)),
            ],
            out_specs=pl.BlockSpec((1, Co8, HW), lambda n: (n, 0, 0)),
        ),
        compiler_params=pltpu.CompilerParams(
            dimension_semantics=("parallel",),
            vmem_limit_bytes=vmem_limit),
    )(x_flat, masks, w1_p, b1_p, w2_p, b2_p)

    # Drop channel padding, restore NCHW.
    return out_flat[:, :Cout, :].reshape(N, Cout, H, W)


def wdsr_a_res_block_ref(x, w1, b1, w2, b2, scaling=1.0):
    """Pure-JAX reference (lax conv, NCHW/OIHW, f32 HIGHEST) matching PyTorch."""
    dn1 = lax.conv_dimension_numbers(x.shape, w1.shape, ("NCHW", "OIHW", "NCHW"))
    h = lax.conv_general_dilated(x, w1, (1, 1), "SAME", dimension_numbers=dn1,
                                 precision=lax.Precision.HIGHEST)
    h = jnp.maximum(h + b1.reshape(1, -1, 1, 1), 0.0)
    dn2 = lax.conv_dimension_numbers(h.shape, w2.shape, ("NCHW", "OIHW", "NCHW"))
    y = lax.conv_general_dilated(h, w2, (1, 1), "SAME", dimension_numbers=dn2,
                                 precision=lax.Precision.HIGHEST)
    y = y + b2.reshape(1, -1, 1, 1)
    return x + float(scaling) * y


if __name__ == "__main__":
    # wdsr_a_res_block(in_shape=4, expansion=2.0, out_shape=4, scaling=1.0)
    in_shape, expansion, out_shape, scaling = 4, 2.0, 4, 1.0
    hidden = int(expansion * in_shape)   # 8
    N, H, W = 2, 16, 16

    key = jax.random.PRNGKey(0)
    kx, kw1, kb1, kw2, kb2 = jax.random.split(key, 5)

    x = jax.random.normal(kx, (N, in_shape, H, W), jnp.float32)
    # PyTorch-layout (OIHW) conv parameters.
    w1 = 0.1 * jax.random.normal(kw1, (hidden, in_shape, 3, 3), jnp.float32)
    b1 = 0.1 * jax.random.normal(kb1, (hidden,), jnp.float32)
    w2 = 0.1 * jax.random.normal(kw2, (out_shape, hidden, 3, 3), jnp.float32)
    b2 = 0.1 * jax.random.normal(kb2, (out_shape,), jnp.float32)

    out = wdsr_a_res_block(x, w1, b1, w2, b2, scaling)
    out = jax.block_until_ready(out)

    ref = wdsr_a_res_block_ref(x, w1, b1, w2, b2, scaling)
    assert out.shape == (N, out_shape, H, W)
    max_err = float(jnp.max(jnp.abs(out - ref)))
    # bf16 MXU operands (f32 accumulate) vs. an f32 HIGHEST reference -> loosened tolerance.
    assert jnp.allclose(out, ref, atol=3e-2, rtol=3e-2), f"mismatch vs reference: {max_err}"

    print("KERNEL_OK")
</pallas_src>

<mosaic_0001>
module attributes {stable_mosaic.version = 11 : i64} {
  func.func @_wdsr_kernel(%arg0: i32, %arg1: memref<1x8x256xf32, #tpu.memory_space<vmem>>, %arg2: memref<8x256xf32, #tpu.memory_space<vmem>>, %arg3: memref<9x8x8xbf16, #tpu.memory_space<vmem>>, %arg4: memref<8x1xf32, #tpu.memory_space<vmem>>, %arg5: memref<9x8x8xbf16, #tpu.memory_space<vmem>>, %arg6: memref<8x1xf32, #tpu.memory_space<vmem>>, %arg7: memref<1x8x256xf32, #tpu.memory_space<vmem>>) attributes {dimension_semantics = [#tpu.dimension_semantics<parallel>], iteration_bounds = array<i64: 2>, scalar_prefetch = 0 : i64, scratch_operands = 0 : i64, tpu.core_type = #tpu.core_type<tc>, window_params = [{transform_indices = @transform_0, window_bounds = array<i64: 1, 8, 256>}, {pipeline_mode = #tpu.pipeline_mode<synchronous>, transform_indices = @transform_1, window_bounds = array<i64: 8, 256>}, {pipeline_mode = #tpu.pipeline_mode<synchronous>, transform_indices = @transform_2, window_bounds = array<i64: 9, 8, 8>}, {pipeline_mode = #tpu.pipeline_mode<synchronous>, transform_indices = @transform_3, window_bounds = array<i64: 8, 1>}, {pipeline_mode = #tpu.pipeline_mode<synchronous>, transform_indices = @transform_4, window_bounds = array<i64: 9, 8, 8>}, {pipeline_mode = #tpu.pipeline_mode<synchronous>, transform_indices = @transform_5, window_bounds = array<i64: 8, 1>}, {transform_indices = @transform_6, window_bounds = array<i64: 1, 8, 256>}]} {
    %c0 = arith.constant 0 : index
    %c0_0 = arith.constant 0 : index
    %c0_1 = arith.constant 0 : index
    %0 = vector.load %arg1[%c0, %c0_0, %c0_1] : memref<1x8x256xf32, #tpu.memory_space<vmem>>, vector<1x8x256xf32>
    %1 = vector.shape_cast %0 : vector<1x8x256xf32> to vector<8x256xf32>
    %c0_2 = arith.constant 0 : index
    %c0_3 = arith.constant 0 : index
    %2 = vector.load %arg2[%c0_2, %c0_3] : memref<8x256xf32, #tpu.memory_space<vmem>>, vector<8x256xf32>
    %cst = arith.constant 0.000000e+00 : f32
    %3 = vector.broadcast %cst : f32 to vector<8x256xf32>
    %c17_i32 = arith.constant 17 : i32
    %4 = tpu.dynamic_rotate %1 by %c17_i32 dim 1 : vector<8x256xf32>, i32 -> vector<8x256xf32>
    %5 = vector.extract_strided_slice %2 {offsets = [0, 0], sizes = [1, 256], strides = [1, 1]} : vector<8x256xf32> to vector<1x256xf32>
    %6 = vector.broadcast %5 : vector<1x256xf32> to vector<8x256xf32>
    %7 = arith.mulf %4, %6 : vector<8x256xf32>
    %c0_4 = arith.constant 0 : index
    %c0_5 = arith.constant 0 : index
    %c0_6 = arith.constant 0 : index
    %8 = vector.load %arg3[%c0_4, %c0_5, %c0_6] : memref<9x8x8xbf16, #tpu.memory_space<vmem>>, vector<1x8x8xbf16>
    %9 = vector.shape_cast %8 : vector<1x8x8xbf16> to vector<8x8xbf16>
    %10 = arith.truncf %7 : vector<8x256xf32> to vector<8x256xbf16>
    %cst_7 = arith.constant dense<0.000000e+00> : vector<8x256xf32>
    %11 = tpu.matmul %9, %10, %cst_7 {dimension_numbers = #tpu.dot_dimension_numbers<[1], [0], [0], [1], [0, 0, 1, 1], [], []>} : vector<8x8xbf16>, vector<8x256xbf16>, vector<8x256xf32> -> vector<8x256xf32>
    %12 = arith.addf %3, %11 : vector<8x256xf32>
    %c16_i32 = arith.constant 16 : i32
    %13 = tpu.dynamic_rotate %1 by %c16_i32 dim 1 : vector<8x256xf32>, i32 -> vector<8x256xf32>
    %14 = vector.extract_strided_slice %2 {offsets = [1, 0], sizes = [1, 256], strides = [1, 1]} : vector<8x256xf32> to vector<1x256xf32>
    %15 = vector.broadcast %14 : vector<1x256xf32> to vector<8x256xf32>
    %16 = arith.mulf %13, %15 : vector<8x256xf32>
    %c1 = arith.constant 1 : index
    %c0_8 = arith.constant 0 : index
    %c0_9 = arith.constant 0 : index
    %17 = vector.load %arg3[%c1, %c0_8, %c0_9] : memref<9x8x8xbf16, #tpu.memory_space<vmem>>, vector<1x8x8xbf16>
    %18 = vector.shape_cast %17 : vector<1x8x8xbf16> to vector<8x8xbf16>
    %19 = arith.truncf %16 : vector<8x256xf32> to vector<8x256xbf16>
    %cst_10 = arith.constant dense<0.000000e+00> : vector<8x256xf32>
    %20 = tpu.matmul %18, %19, %cst_10 {dimension_numbers = #tpu.dot_dimension_numbers<[1], [0], [0], [1], [0, 0, 1, 1], [], []>} : vector<8x8xbf16>, vector<8x256xbf16>, vector<8x256xf32> -> vector<8x256xf32>
    %21 = arith.addf %12, %20 : vector<8x256xf32>
    %c15_i32 = arith.constant 15 : i32
    %22 = tpu.dynamic_rotate %1 by %c15_i32 dim 1 : vector<8x256xf32>, i32 -> vector<8x256xf32>
    %23 = vector.extract_strided_slice %2 {offsets = [2, 0], sizes = [1, 256], strides = [1, 1]} : vector<8x256xf32> to vector<1x256xf32>
    %24 = vector.broadcast %23 : vector<1x256xf32> to vector<8x256xf32>
    %25 = arith.mulf %22, %24 : vector<8x256xf32>
    %c2 = arith.constant 2 : index
    %c0_11 = arith.constant 0 : index
    %c0_12 = arith.constant 0 : index
    %26 = vector.load %arg3[%c2, %c0_11, %c0_12] : memref<9x8x8xbf16, #tpu.memory_space<vmem>>, vector<1x8x8xbf16>
    %27 = vector.shape_cast %26 : vector<1x8x8xbf16> to vector<8x8xbf16>
    %28 = arith.truncf %25 : vector<8x256xf32> to vector<8x256xbf16>
    %cst_13 = arith.constant dense<0.000000e+00> : vector<8x256xf32>
    %29 = tpu.matmul %27, %28, %cst_13 {dimension_numbers = #tpu.dot_dimension_numbers<[1], [0], [0], [1], [0, 0, 1, 1], [], []>} : vector<8x8xbf16>, vector<8x256xbf16>, vector<8x256xf32> -> vector<8x256xf32>
    %30 = arith.addf %21, %29 : vector<8x256xf32>
    %c1_i32 = arith.constant 1 : i32
    %31 = tpu.dynamic_rotate %1 by %c1_i32 dim 1 : vector<8x256xf32>, i32 -> vector<8x256xf32>
    %32 = vector.extract_strided_slice %2 {offsets = [3, 0], sizes = [1, 256], strides = [1, 1]} : vector<8x256xf32> to vector<1x256xf32>
    %33 = vector.broadcast %32 : vector<1x256xf32> to vector<8x256xf32>
    %34 = arith.mulf %31, %33 : vector<8x256xf32>
    %c3 = arith.constant 3 : index
    %c0_14 = arith.constant 0 : index
    %c0_15 = arith.constant 0 : index
    %35 = vector.load %arg3[%c3, %c0_14, %c0_15] : memref<9x8x8xbf16, #tpu.memory_space<vmem>>, vector<1x8x8xbf16>
    %36 = vector.shape_cast %35 : vector<1x8x8xbf16> to vector<8x8xbf16>
    %37 = arith.truncf %34 : vector<8x256xf32> to vector<8x256xbf16>
    %cst_16 = arith.constant dense<0.000000e+00> : vector<8x256xf32>
    %38 = tpu.matmul %36, %37, %cst_16 {dimension_numbers = #tpu.dot_dimension_numbers<[1], [0], [0], [1], [0, 0, 1, 1], [], []>} : vector<8x8xbf16>, vector<8x256xbf16>, vector<8x256xf32> -> vector<8x256xf32>
    %39 = arith.addf %30, %38 : vector<8x256xf32>
    %c4 = arith.constant 4 : index
    %c0_17 = arith.constant 0 : index
    %c0_18 = arith.constant 0 : index
    %40 = vector.load %arg3[%c4, %c0_17, %c0_18] : memref<9x8x8xbf16, #tpu.memory_space<vmem>>, vector<1x8x8xbf16>
    %41 = vector.shape_cast %40 : vector<1x8x8xbf16> to vector<8x8xbf16>
    %42 = arith.truncf %1 : vector<8x256xf32> to vector<8x256xbf16>
    %cst_19 = arith.constant dense<0.000000e+00> : vector<8x256xf32>
    %43 = tpu.matmul %41, %42, %cst_19 {dimension_numbers = #tpu.dot_dimension_numbers<[1], [0], [0], [1], [0, 0, 1, 1], [], []>} : vector<8x8xbf16>, vector<8x256xbf16>, vector<8x256xf32> -> vector<8x256xf32>
    %44 = arith.addf %39, %43 : vector<8x256xf32>
    %c255_i32 = arith.constant 255 : i32
    %45 = tpu.dynamic_rotate %1 by %c255_i32 dim 1 : vector<8x256xf32>, i32 -> vector<8x256xf32>
    %46 = vector.extract_strided_slice %2 {offsets = [4, 0], sizes = [1, 256], strides = [1, 1]} : vector<8x256xf32> to vector<1x256xf32>
    %47 = vector.broadcast %46 : vector<1x256xf32> to vector<8x256xf32>
    %48 = arith.mulf %45, %47 : vector<8x256xf32>
    %c5 = arith.constant 5 : index
    %c0_20 = arith.constant 0 : index
    %c0_21 = arith.constant 0 : index
    %49 = vector.load %arg3[%c5, %c0_20, %c0_21] : memref<9x8x8xbf16, #tpu.memory_space<vmem>>, vector<1x8x8xbf16>
    %50 = vector.shape_cast %49 : vector<1x8x8xbf16> to vector<8x8xbf16>
    %51 = arith.truncf %48 : vector<8x256xf32> to vector<8x256xbf16>
    %cst_22 = arith.constant dense<0.000000e+00> : vector<8x256xf32>
    %52 = tpu.matmul %50, %51, %cst_22 {dimension_numbers = #tpu.dot_dimension_numbers<[1], [0], [0], [1], [0, 0, 1, 1], [], []>} : vector<8x8xbf16>, vector<8x256xbf16>, vector<8x256xf32> -> vector<8x256xf32>
    %53 = arith.addf %44, %52 : vector<8x256xf32>
    %c241_i32 = arith.constant 241 : i32
    %54 = tpu.dynamic_rotate %1 by %c241_i32 dim 1 : vector<8x256xf32>, i32 -> vector<8x256xf32>
    %55 = vector.extract_strided_slice %2 {offsets = [5, 0], sizes = [1, 256], strides = [1, 1]} : vector<8x256xf32> to vector<1x256xf32>
    %56 = vector.broadcast %55 : vector<1x256xf32> to vector<8x256xf32>
    %57 = arith.mulf %54, %56 : vector<8x256xf32>
    %c6 = arith.constant 6 : index
    %c0_23 = arith.constant 0 : index
    %c0_24 = arith.constant 0 : index
    %58 = vector.load %arg3[%c6, %c0_23, %c0_24] : memref<9x8x8xbf16, #tpu.memory_space<vmem>>, vector<1x8x8xbf16>
    %59 = vector.shape_cast %58 : vector<1x8x8xbf16> to vector<8x8xbf16>
    %60 = arith.truncf %57 : vector<8x256xf32> to vector<8x256xbf16>
    %cst_25 = arith.constant dense<0.000000e+00> : vector<8x256xf32>
    %61 = tpu.matmul %59, %60, %cst_25 {dimension_numbers = #tpu.dot_dimension_numbers<[1], [0], [0], [1], [0, 0, 1, 1], [], []>} : vector<8x8xbf16>, vector<8x256xbf16>, vector<8x256xf32> -> vector<8x256xf32>
    %62 = arith.addf %53, %61 : vector<8x256xf32>
    %c240_i32 = arith.constant 240 : i32
    %63 = tpu.dynamic_rotate %1 by %c240_i32 dim 1 : vector<8x256xf32>, i32 -> vector<8x256xf32>
    %64 = vector.extract_strided_slice %2 {offsets = [6, 0], sizes = [1, 256], strides = [1, 1]} : vector<8x256xf32> to vector<1x256xf32>
    %65 = vector.broadcast %64 : vector<1x256xf32> to vector<8x256xf32>
    %66 = arith.mulf %63, %65 : vector<8x256xf32>
    %c7 = arith.constant 7 : index
    %c0_26 = arith.constant 0 : index
    %c0_27 = arith.constant 0 : index
    %67 = vector.load %arg3[%c7, %c0_26, %c0_27] : memref<9x8x8xbf16, #tpu.memory_space<vmem>>, vector<1x8x8xbf16>
    %68 = vector.shape_cast %67 : vector<1x8x8xbf16> to vector<8x8xbf16>
    %69 = arith.truncf %66 : vector<8x256xf32> to vector<8x256xbf16>
    %cst_28 = arith.constant dense<0.000000e+00> : vector<8x256xf32>
    %70 = tpu.matmul %68, %69, %cst_28 {dimension_numbers = #tpu.dot_dimension_numbers<[1], [0], [0], [1], [0, 0, 1, 1], [], []>} : vector<8x8xbf16>, vector<8x256xbf16>, vector<8x256xf32> -> vector<8x256xf32>
    %71 = arith.addf %62, %70 : vector<8x256xf32>
    %c239_i32 = arith.constant 239 : i32
    %72 = tpu.dynamic_rotate %1 by %c239_i32 dim 1 : vector<8x256xf32>, i32 -> vector<8x256xf32>
    %73 = vector.extract_strided_slice %2 {offsets = [7, 0], sizes = [1, 256], strides = [1, 1]} : vector<8x256xf32> to vector<1x256xf32>
    %74 = vector.broadcast %73 : vector<1x256xf32> to vector<8x256xf32>
    %75 = arith.mulf %72, %74 : vector<8x256xf32>
    %c8 = arith.constant 8 : index
    %c0_29 = arith.constant 0 : index
    %c0_30 = arith.constant 0 : index
    %76 = vector.load %arg3[%c8, %c0_29, %c0_30] : memref<9x8x8xbf16, #tpu.memory_space<vmem>>, vector<1x8x8xbf16>
    %77 = vector.shape_cast %76 : vector<1x8x8xbf16> to vector<8x8xbf16>
    %78 = arith.truncf %75 : vector<8x256xf32> to vector<8x256xbf16>
    %cst_31 = arith.constant dense<0.000000e+00> : vector<8x256xf32>
    %79 = tpu.matmul %77, %78, %cst_31 {dimension_numbers = #tpu.dot_dimension_numbers<[1], [0], [0], [1], [0, 0, 1, 1], [], []>} : vector<8x8xbf16>, vector<8x256xbf16>, vector<8x256xf32> -> vector<8x256xf32>
    %80 = arith.addf %71, %79 : vector<8x256xf32>
    %c0_32 = arith.constant 0 : index
    %c0_33 = arith.constant 0 : index
    %81 = vector.load %arg4[%c0_32, %c0_33] : memref<8x1xf32, #tpu.memory_space<vmem>>, vector<8x1xf32>
    %82 = vector.broadcast %81 : vector<8x1xf32> to vector<8x256xf32>
    %83 = arith.addf %80, %82 : vector<8x256xf32>
    %cst_34 = arith.constant 0.000000e+00 : f32
    %84 = vector.broadcast %cst_34 : f32 to vector<8x256xf32>
    %85 = arith.maximumf %83, %84 : vector<8x256xf32>
    %cst_35 = arith.constant 0.000000e+00 : f32
    %86 = vector.broadcast %cst_35 : f32 to vector<8x256xf32>
    %c17_i32_36 = arith.constant 17 : i32
    %87 = tpu.dynamic_rotate %85 by %c17_i32_36 dim 1 : vector<8x256xf32>, i32 -> vector<8x256xf32>
    %88 = vector.extract_strided_slice %2 {offsets = [0, 0], sizes = [1, 256], strides = [1, 1]} : vector<8x256xf32> to vector<1x256xf32>
    %89 = vector.broadcast %88 : vector<1x256xf32> to vector<8x256xf32>
    %90 = arith.mulf %87, %89 : vector<8x256xf32>
    %c0_37 = arith.constant 0 : index
    %c0_38 = arith.constant 0 : index
    %c0_39 = arith.constant 0 : index
    %91 = vector.load %arg5[%c0_37, %c0_38, %c0_39] : memref<9x8x8xbf16, #tpu.memory_space<vmem>>, vector<1x8x8xbf16>
    %92 = vector.shape_cast %91 : vector<1x8x8xbf16> to vector<8x8xbf16>
    %93 = arith.truncf %90 : vector<8x256xf32> to vector<8x256xbf16>
    %cst_40 = arith.constant dense<0.000000e+00> : vector<8x256xf32>
    %94 = tpu.matmul %92, %93, %cst_40 {dimension_numbers = #tpu.dot_dimension_numbers<[1], [0], [0], [1], [0, 0, 1, 1], [], []>} : vector<8x8xbf16>, vector<8x256xbf16>, vector<8x256xf32> -> vector<8x256xf32>
    %95 = arith.addf %86, %94 : vector<8x256xf32>
    %c16_i32_41 = arith.constant 16 : i32
    %96 = tpu.dynamic_rotate %85 by %c16_i32_41 dim 1 : vector<8x256xf32>, i32 -> vector<8x256xf32>
    %97 = vector.extract_strided_slice %2 {offsets = [1, 0], sizes = [1, 256], strides = [1, 1]} : vector<8x256xf32> to vector<1x256xf32>
    %98 = vector.broadcast %97 : vector<1x256xf32> to vector<8x256xf32>
    %99 = arith.mulf %96, %98 : vector<8x256xf32>
    %c1_42 = arith.constant 1 : index
    %c0_43 = arith.constant 0 : index
    %c0_44 = arith.constant 0 : index
    %100 = vector.load %arg5[%c1_42, %c0_43, %c0_44] : memref<9x8x8xbf16, #tpu.memory_space<vmem>>, vector<1x8x8xbf16>
    %101 = vector.shape_cast %100 : vector<1x8x8xbf16> to vector<8x8xbf16>
    %102 = arith.truncf %99 : vector<8x256xf32> to vector<8x256xbf16>
    %cst_45 = arith.constant dense<0.000000e+00> : vector<8x256xf32>
    %103 = tpu.matmul %101, %102, %cst_45 {dimension_numbers = #tpu.dot_dimension_numbers<[1], [0], [0], [1], [0, 0, 1, 1], [], []>} : vector<8x8xbf16>, vector<8x256xbf16>, vector<8x256xf32> -> vector<8x256xf32>
    %104 = arith.addf %95, %103 : vector<8x256xf32>
    %c15_i32_46 = arith.constant 15 : i32
    %105 = tpu.dynamic_rotate %85 by %c15_i32_46 dim 1 : vector<8x256xf32>, i32 -> vector<8x256xf32>
    %106 = vector.extract_strided_slice %2 {offsets = [2, 0], sizes = [1, 256], strides = [1, 1]} : vector<8x256xf32> to vector<1x256xf32>
    %107 = vector.broadcast %106 : vector<1x256xf32> to vector<8x256xf32>
    %108 = arith.mulf %105, %107 : vector<8x256xf32>
    %c2_47 = arith.constant 2 : index
    %c0_48 = arith.constant 0 : index
    %c0_49 = arith.constant 0 : index
    %109 = vector.load %arg5[%c2_47, %c0_48, %c0_49] : memref<9x8x8xbf16, #tpu.memory_space<vmem>>, vector<1x8x8xbf16>
    %110 = vector.shape_cast %109 : vector<1x8x8xbf16> to vector<8x8xbf16>
    %111 = arith.truncf %108 : vector<8x256xf32> to vector<8x256xbf16>
    %cst_50 = arith.constant dense<0.000000e+00> : vector<8x256xf32>
    %112 = tpu.matmul %110, %111, %cst_50 {dimension_numbers = #tpu.dot_dimension_numbers<[1], [0], [0], [1], [0, 0, 1, 1], [], []>} : vector<8x8xbf16>, vector<8x256xbf16>, vector<8x256xf32> -> vector<8x256xf32>
    %113 = arith.addf %104, %112 : vector<8x256xf32>
    %c1_i32_51 = arith.constant 1 : i32
    %114 = tpu.dynamic_rotate %85 by %c1_i32_51 dim 1 : vector<8x256xf32>, i32 -> vector<8x256xf32>
    %115 = vector.extract_strided_slice %2 {offsets = [3, 0], sizes = [1, 256], strides = [1, 1]} : vector<8x256xf32> to vector<1x256xf32>
    %116 = vector.broadcast %115 : vector<1x256xf32> to vector<8x256xf32>
    %117 = arith.mulf %114, %116 : vector<8x256xf32>
    %c3_52 = arith.constant 3 : index
    %c0_53 = arith.constant 0 : index
    %c0_54 = arith.constant 0 : index
    %118 = vector.load %arg5[%c3_52, %c0_53, %c0_54] : memref<9x8x8xbf16, #tpu.memory_space<vmem>>, vector<1x8x8xbf16>
    %119 = vector.shape_cast %118 : vector<1x8x8xbf16> to vector<8x8xbf16>
    %120 = arith.truncf %117 : vector<8x256xf32> to vector<8x256xbf16>
    %cst_55 = arith.constant dense<0.000000e+00> : vector<8x256xf32>
    %121 = tpu.matmul %119, %120, %cst_55 {dimension_numbers = #tpu.dot_dimension_numbers<[1], [0], [0], [1], [0, 0, 1, 1], [], []>} : vector<8x8xbf16>, vector<8x256xbf16>, vector<8x256xf32> -> vector<8x256xf32>
    %122 = arith.addf %113, %121 : vector<8x256xf32>
    %c4_56 = arith.constant 4 : index
    %c0_57 = arith.constant 0 : index
    %c0_58 = arith.constant 0 : index
    %123 = vector.load %arg5[%c4_56, %c0_57, %c0_58] : memref<9x8x8xbf16, #tpu.memory_space<vmem>>, vector<1x8x8xbf16>
    %124 = vector.shape_cast %123 : vector<1x8x8xbf16> to vector<8x8xbf16>
    %125 = arith.truncf %85 : vector<8x256xf32> to vector<8x256xbf16>
    %cst_59 = arith.constant dense<0.000000e+00> : vector<8x256xf32>
    %126 = tpu.matmul %124, %125, %cst_59 {dimension_numbers = #tpu.dot_dimension_numbers<[1], [0], [0], [1], [0, 0, 1, 1], [], []>} : vector<8x8xbf16>, vector<8x256xbf16>, vector<8x256xf32> -> vector<8x256xf32>
    %127 = arith.addf %122, %126 : vector<8x256xf32>
    %c255_i32_60 = arith.constant 255 : i32
    %128 = tpu.dynamic_rotate %85 by %c255_i32_60 dim 1 : vector<8x256xf32>, i32 -> vector<8x256xf32>
    %129 = vector.extract_strided_slice %2 {offsets = [4, 0], sizes = [1, 256], strides = [1, 1]} : vector<8x256xf32> to vector<1x256xf32>
    %130 = vector.broadcast %129 : vector<1x256xf32> to vector<8x256xf32>
    %131 = arith.mulf %128, %130 : vector<8x256xf32>
    %c5_61 = arith.constant 5 : index
    %c0_62 = arith.constant 0 : index
    %c0_63 = arith.constant 0 : index
    %132 = vector.load %arg5[%c5_61, %c0_62, %c0_63] : memref<9x8x8xbf16, #tpu.memory_space<vmem>>, vector<1x8x8xbf16>
    %133 = vector.shape_cast %132 : vector<1x8x8xbf16> to vector<8x8xbf16>
    %134 = arith.truncf %131 : vector<8x256xf32> to vector<8x256xbf16>
    %cst_64 = arith.constant dense<0.000000e+00> : vector<8x256xf32>
    %135 = tpu.matmul %133, %134, %cst_64 {dimension_numbers = #tpu.dot_dimension_numbers<[1], [0], [0], [1], [0, 0, 1, 1], [], []>} : vector<8x8xbf16>, vector<8x256xbf16>, vector<8x256xf32> -> vector<8x256xf32>
    %136 = arith.addf %127, %135 : vector<8x256xf32>
    %c241_i32_65 = arith.constant 241 : i32
    %137 = tpu.dynamic_rotate %85 by %c241_i32_65 dim 1 : vector<8x256xf32>, i32 -> vector<8x256xf32>
    %138 = vector.extract_strided_slice %2 {offsets = [5, 0], sizes = [1, 256], strides = [1, 1]} : vector<8x256xf32> to vector<1x256xf32>
    %139 = vector.broadcast %138 : vector<1x256xf32> to vector<8x256xf32>
    %140 = arith.mulf %137, %139 : vector<8x256xf32>
    %c6_66 = arith.constant 6 : index
    %c0_67 = arith.constant 0 : index
    %c0_68 = arith.constant 0 : index
    %141 = vector.load %arg5[%c6_66, %c0_67, %c0_68] : memref<9x8x8xbf16, #tpu.memory_space<vmem>>, vector<1x8x8xbf16>
    %142 = vector.shape_cast %141 : vector<1x8x8xbf16> to vector<8x8xbf16>
    %143 = arith.truncf %140 : vector<8x256xf32> to vector<8x256xbf16>
    %cst_69 = arith.constant dense<0.000000e+00> : vector<8x256xf32>
    %144 = tpu.matmul %142, %143, %cst_69 {dimension_numbers = #tpu.dot_dimension_numbers<[1], [0], [0], [1], [0, 0, 1, 1], [], []>} : vector<8x8xbf16>, vector<8x256xbf16>, vector<8x256xf32> -> vector<8x256xf32>
    %145 = arith.addf %136, %144 : vector<8x256xf32>
    %c240_i32_70 = arith.constant 240 : i32
    %146 = tpu.dynamic_rotate %85 by %c240_i32_70 dim 1 : vector<8x256xf32>, i32 -> vector<8x256xf32>
    %147 = vector.extract_strided_slice %2 {offsets = [6, 0], sizes = [1, 256], strides = [1, 1]} : vector<8x256xf32> to vector<1x256xf32>
    %148 = vector.broadcast %147 : vector<1x256xf32> to vector<8x256xf32>
    %149 = arith.mulf %146, %148 : vector<8x256xf32>
    %c7_71 = arith.constant 7 : index
    %c0_72 = arith.constant 0 : index
    %c0_73 = arith.constant 0 : index
    %150 = vector.load %arg5[%c7_71, %c0_72, %c0_73] : memref<9x8x8xbf16, #tpu.memory_space<vmem>>, vector<1x8x8xbf16>
    %151 = vector.shape_cast %150 : vector<1x8x8xbf16> to vector<8x8xbf16>
    %152 = arith.truncf %149 : vector<8x256xf32> to vector<8x256xbf16>
    %cst_74 = arith.constant dense<0.000000e+00> : vector<8x256xf32>
    %153 = tpu.matmul %151, %152, %cst_74 {dimension_numbers = #tpu.dot_dimension_numbers<[1], [0], [0], [1], [0, 0, 1, 1], [], []>} : vector<8x8xbf16>, vector<8x256xbf16>, vector<8x256xf32> -> vector<8x256xf32>
    %154 = arith.addf %145, %153 : vector<8x256xf32>
    %c239_i32_75 = arith.constant 239 : i32
    %155 = tpu.dynamic_rotate %85 by %c239_i32_75 dim 1 : vector<8x256xf32>, i32 -> vector<8x256xf32>
    %156 = vector.extract_strided_slice %2 {offsets = [7, 0], sizes = [1, 256], strides = [1, 1]} : vector<8x256xf32> to vector<1x256xf32>
    %157 = vector.broadcast %156 : vector<1x256xf32> to vector<8x256xf32>
    %158 = arith.mulf %155, %157 : vector<8x256xf32>
    %c8_76 = arith.constant 8 : index
    %c0_77 = arith.constant 0 : index
    %c0_78 = arith.constant 0 : index
    %159 = vector.load %arg5[%c8_76, %c0_77, %c0_78] : memref<9x8x8xbf16, #tpu.memory_space<vmem>>, vector<1x8x8xbf16>
    %160 = vector.shape_cast %159 : vector<1x8x8xbf16> to vector<8x8xbf16>
    %161 = arith.truncf %158 : vector<8x256xf32> to vector<8x256xbf16>
    %cst_79 = arith.constant dense<0.000000e+00> : vector<8x256xf32>
    %162 = tpu.matmul %160, %161, %cst_79 {dimension_numbers = #tpu.dot_dimension_numbers<[1], [0], [0], [1], [0, 0, 1, 1], [], []>} : vector<8x8xbf16>, vector<8x256xbf16>, vector<8x256xf32> -> vector<8x256xf32>
    %163 = arith.addf %154, %162 : vector<8x256xf32>
    %c0_80 = arith.constant 0 : index
    %c0_81 = arith.constant 0 : index
    %164 = vector.load %arg6[%c0_80, %c0_81] : memref<8x1xf32, #tpu.memory_space<vmem>>, vector<8x1xf32>
    %165 = vector.broadcast %164 : vector<8x1xf32> to vector<8x256xf32>
    %166 = arith.addf %163, %165 : vector<8x256xf32>
    %cst_82 = arith.constant 1.000000e+00 : f32
    %167 = vector.broadcast %cst_82 : f32 to vector<8x256xf32>
    %168 = arith.mulf %167, %166 : vector<8x256xf32>
    %169 = arith.addf %1, %168 : vector<8x256xf32>
    %c0_83 = arith.constant 0 : index
    %c0_84 = arith.constant 0 : index
    %c0_85 = arith.constant 0 : index
    %170 = vector.load %arg7[%c0_83, %c0_84, %c0_85] : memref<1x8x256xf32, #tpu.memory_space<vmem>>, vector<1x8x256xf32>
    %171 = vector.shape_cast %170 : vector<1x8x256xf32> to vector<8x256xf32>
    %172 = vector.shape_cast %169 : vector<8x256xf32> to vector<1x8x256xf32>
    tpu.vector_store %arg7[%c0_83, %c0_84, %c0_85], %172 {strides = array<i32>} : memref<1x8x256xf32, #tpu.memory_space<vmem>>, vector<1x8x256xf32>,
    return
  }
  func.func @transform_0(%arg0: i32) -> (i32, i32, i32) {
    %c0_i32 = arith.constant 0 : i32
    %c0_i32_0 = arith.constant 0 : i32
    %c0_i32_1 = arith.constant 0 : i32
    return %arg0, %c0_i32, %c0_i32_0 : i32, i32, i32
  }
  func.func @transform_1(%arg0: i32) -> (i32, i32) {
    %c0_i32 = arith.constant 0 : i32
    %c0_i32_0 = arith.constant 0 : i32
    %c0_i32_1 = arith.constant 0 : i32
    return %c0_i32, %c0_i32_0 : i32, i32
  }
  func.func @transform_2(%arg0: i32) -> (i32, i32, i32) {
    %c0_i32 = arith.constant 0 : i32
    %c0_i32_0 = arith.constant 0 : i32
    %c0_i32_1 = arith.constant 0 : i32
    %c0_i32_2 = arith.constant 0 : i32
    return %c0_i32, %c0_i32_0, %c0_i32_1 : i32, i32, i32
  }
  func.func @transform_3(%arg0: i32) -> (i32, i32) {
    %c0_i32 = arith.constant 0 : i32
    %c0_i32_0 = arith.constant 0 : i32
    %c0_i32_1 = arith.constant 0 : i32
    return %c0_i32, %c0_i32_0 : i32, i32
  }
  func.func @transform_4(%arg0: i32) -> (i32, i32, i32) {
    %c0_i32 = arith.constant 0 : i32
    %c0_i32_0 = arith.constant 0 : i32
    %c0_i32_1 = arith.constant 0 : i32
    %c0_i32_2 = arith.constant 0 : i32
    return %c0_i32, %c0_i32_0, %c0_i32_1 : i32, i32, i32
  }
  func.func @transform_5(%arg0: i32) -> (i32, i32) {
    %c0_i32 = arith.constant 0 : i32
    %c0_i32_0 = arith.constant 0 : i32
    %c0_i32_1 = arith.constant 0 : i32
    return %c0_i32, %c0_i32_0 : i32, i32
  }
  func.func @transform_6(%arg0: i32) -> (i32, i32, i32) {
    %c0_i32 = arith.constant 0 : i32
    %c0_i32_0 = arith.constant 0 : i32
    %c0_i32_1 = arith.constant 0 : i32
    return %arg0, %c0_i32, %c0_i32_0 : i32, i32, i32
  }
}

</mosaic_0001>

<llo_original>
// kernel: tpu_custom_call.1
$region0: #{tpu_custom_call.1}
  #allocation0 [shape = 'u32[]', space=smem, size = 0x4, offset = 0x4, fixed_abs, tag = 'smem constant byte address 0x4 - core index']
  #allocation1 [shape = 'u32[144,128]{1,0:T(1,128)}', space=vmem, size = 0x12000, scoped, tag = 'internal scratch']
  %s0 = inlined_call_operand.vmem [shape: f32[2,8,256], index: 0, kind: input, shape index: {}]
  %s1 = inlined_call_operand.vmem [shape: f32[8,256], index: 1, kind: input, shape index: {}]
  %s2 = inlined_call_operand.vmem [shape: bf16[9,8,8], index: 2, kind: input, shape index: {}]
  %s3 = inlined_call_operand.vmem [shape: f32[8,1], index: 3, kind: input, shape index: {}]
  %s4 = inlined_call_operand.vmem [shape: bf16[9,8,8], index: 4, kind: input, shape index: {}]
  %s5 = inlined_call_operand.vmem [shape: f32[8,1], index: 5, kind: input, shape index: {}]
  %s6 = inlined_call_operand.hbm [shape: f32[2,8,256], index: 6, kind: output, shape index: {}]
  %s7 = sld [smem:[#allocation0]]
  $region57: #{tpu_custom_call.1} parent=0
    _
  %s9 = ssub.s32 1, %s7
  %s10 = scalar_select 0, %s9, %s7
  $region1: #{tpu_custom_call.1} parent=0
    #allocation2 [shape = 'u8[16384]{0}', space=vmem, size = 0x4000, scoped, tag = 'output window, operand 0']
    #allocation3 [shape = 's32[2]{0}', space=sflag, size = 0x8, scoped, tag = 'scoped memory for tpu_custom_call.1']
    %11 = vsyncpa [#allocation3], 0
    %s12 = scalar_lea.sflag [#allocation3], 1
    %13 = vsyncpa %s12, 0
    loop: start=0, step=1, limit=4
    $region2: #{tpu_custom_call.1} parent=1 // loop_pre_header
      _
    $region3: #{tpu_custom_call.1} parent=1 // loop_header
      %s15 = sphi 0, %s19
      %p16 = scmp.ge.s32.totalorder %s15, 4
      %s25 = sphi 0, %s27
      %s28 = sphi 0, %s25
      %s29 = sphi 0, %s28
      %s45 = sphi 0, %s29
      %s49 = sphi 0, %s49
      %s51 = sphi 0, %s49
      %s52 = sphi 0, %s51
      %s66 = sphi 0, %s52
      %s70 = sphi 0, %s70
      %s72 = sphi 0, %s70
      %s73 = sphi 0, %s72
      %s87 = sphi 0, %s73
      %s91 = sphi 0, %s91
      %s93 = sphi 0, %s91
      %s94 = sphi 0, %s93
      %s108 = sphi 0, %s94
      %s112 = sphi 0, %s112
      %s114 = sphi 0, %s112
      %s115 = sphi 0, %s114
      %s129 = sphi 0, %s115
      %s133 = sphi 0, %s133
      %s135 = sphi 0, %s133
      %s136 = sphi 0, %s135
      %s150 = sphi 0, %s136
      %s156 = sphi 0, %s158
      %s159 = sphi 0, %s156
      %s160 = sphi 0, %s159
      %s176 = sphi 0, %s160
    $region4: #{tpu_custom_call.1} parent=1 // loop_header_branch
      %18 = sbr.rel (%p16) target = $region8
    $region5: #{tpu_custom_call.1} parent=1 // loop_body
      %s20 = ssub.s32 %s15, 1
      %s21 = ssub.s32 %s15, 2
      %s22 = sadd.s32 %s15, 1
      %s23 = ssub.s32 %s15, %s22
      %p24 = scmp.eq.s32.totalorder %s23, 0
      %s26 = sadd.s32 %s25, 1
      %s27 = scalar_select %p24, %s25, %s26
      %p30 = pneg %p24
      %p31 = scmp.eq.s32.totalorder %s15, 1
      %p32 = por %p30, %p31
      %p33 = scmp.ne.s32.totalorder %s25, %s28
      %p34 = scmp.eq.s32.totalorder %s15, 0
      %p35 = por %p33, %p34
      %p36 = scmp.ne.s32.totalorder %s25, %s28
      %p37 = scmp.eq.s32.totalorder %s20, 1
      %p38 = por %p36, %p37
      %p39 = scmp.ne.s32.totalorder %s28, %s29
      %p40 = scmp.eq.s32.totalorder %s20, 0
      %p41 = por %p39, %p40
      %p42 = scmp.ne.s32.totalorder %s28, %s29
      %p43 = scmp.eq.s32.totalorder %s21, 1
      %p44 = por %p42, %p43
      %p46 = scmp.ne.s32.totalorder %s29, %s45
      %p47 = scmp.eq.s32.totalorder %s21, 0
      %p48 = por %p46, %p47
      %s50 = sadd.s32 %s49, 1
      %p53 = scmp.eq.s32.totalorder %s15, 1
      %p54 = scmp.ne.s32.totalorder %s49, %s51
      %p55 = scmp.eq.s32.totalorder %s15, 0
      %p56 = por %p54, %p55
      %p57 = scmp.ne.s32.totalorder %s49, %s51
      %p58 = scmp.eq.s32.totalorder %s20, 1
      %p59 = por %p57, %p58
      %p60 = scmp.ne.s32.totalorder %s51, %s52
      %p61 = scmp.eq.s32.totalorder %s20, 0
      %p62 = por %p60, %p61
      %p63 = scmp.ne.s32.totalorder %s51, %s52
      %p64 = scmp.eq.s32.totalorder %s21, 1
      %p65 = por %p63, %p64
      %p67 = scmp.ne.s32.totalorder %s52, %s66
      %p68 = scmp.eq.s32.totalorder %s21, 0
      %p69 = por %p67, %p68
      %s71 = sadd.s32 %s70, 1
      %p74 = scmp.eq.s32.totalorder %s15, 1
      %p75 = scmp.ne.s32.totalorder %s70, %s72
      %p76 = scmp.eq.s32.totalorder %s15, 0
      %p77 = por %p75, %p76
      %p78 = scmp.ne.s32.totalorder %s70, %s72
      %p79 = scmp.eq.s32.totalorder %s20, 1
      %p80 = por %p78, %p79
      %p81 = scmp.ne.s32.totalorder %s72, %s73
      %p82 = scmp.eq.s32.totalorder %s20, 0
      %p83 = por %p81, %p82
      %p84 = scmp.ne.s32.totalorder %s72, %s73
      %p85 = scmp.eq.s32.totalorder %s21, 1
      %p86 = por %p84, %p85
      %p88 = scmp.ne.s32.totalorder %s73, %s87
      %p89 = scmp.eq.s32.totalorder %s21, 0
      %p90 = por %p88, %p89
      %s92 = sadd.s32 %s91, 1
      %p95 = scmp.eq.s32.totalorder %s15, 1
      %p96 = scmp.ne.s32.totalorder %s91, %s93
      %p97 = scmp.eq.s32.totalorder %s15, 0
      %p98 = por %p96, %p97
      %p99 = scmp.ne.s32.totalorder %s91, %s93
      %p100 = scmp.eq.s32.totalorder %s20, 1
      %p101 = por %p99, %p100
      %p102 = scmp.ne.s32.totalorder %s93, %s94
      %p103 = scmp.eq.s32.totalorder %s20, 0
      %p104 = por %p102, %p103
      %p105 = scmp.ne.s32.totalorder %s93, %s94
      %p106 = scmp.eq.s32.totalorder %s21, 1
      %p107 = por %p105, %p106
      %p109 = scmp.ne.s32.totalorder %s94, %s108
      %p110 = scmp.eq.s32.totalorder %s21, 0
      %p111 = por %p109, %p110
      %s113 = sadd.s32 %s112, 1
      %p116 = scmp.eq.s32.totalorder %s15, 1
      %p117 = scmp.ne.s32.totalorder %s112, %s114
      %p118 = scmp.eq.s32.totalorder %s15, 0
      %p119 = por %p117, %p118
      %p120 = scmp.ne.s32.totalorder %s112, %s114
      %p121 = scmp.eq.s32.totalorder %s20, 1
      %p122 = por %p120, %p121
      %p123 = scmp.ne.s32.totalorder %s114, %s115
      %p124 = scmp.eq.s32.totalorder %s20, 0
      %p125 = por %p123, %p124
      %p126 = scmp.ne.s32.totalorder %s114, %s115
      %p127 = scmp.eq.s32.totalorder %s21, 1
      %p128 = por %p126, %p127
      %p130 = scmp.ne.s32.totalorder %s115, %s129
      %p131 = scmp.eq.s32.totalorder %s21, 0
      %p132 = por %p130, %p131
      %s134 = sadd.s32 %s133, 1
      %p137 = scmp.eq.s32.totalorder %s15, 1
      %p138 = scmp.ne.s32.totalorder %s133, %s135
      %p139 = scmp.eq.s32.totalorder %s15, 0
      %p140 = por %p138, %p139
      %p141 = scmp.ne.s32.totalorder %s133, %s135
      %p142 = scmp.eq.s32.totalorder %s20, 1
      %p143 = por %p141, %p142
      %p144 = scmp.ne.s32.totalorder %s135, %s136
      %p145 = scmp.eq.s32.totalorder %s20, 0
      %p146 = por %p144, %p145
      %p147 = scmp.ne.s32.totalorder %s135, %s136
      %p148 = scmp.eq.s32.totalorder %s21, 1
      %p149 = por %p147, %p148
      %p151 = scmp.ne.s32.totalorder %s136, %s150
      %p152 = scmp.eq.s32.totalorder %s21, 0
      %p153 = por %p151, %p152
      %s154 = ssub.s32 %s15, %s22
      %p155 = scmp.eq.s32.totalorder %s154, 0
      %s157 = sadd.s32 %s156, 1
      %s158 = scalar_select %p155, %s156, %s157
      %p161 = pneg %p155
      %p162 = scmp.eq.s32.totalorder %s15, 1
      %p163 = por %p161, %p162
      %p164 = scmp.ne.s32.totalorder %s156, %s159
      %p165 = scmp.eq.s32.totalorder %s15, 0
      %p166 = por %p164, %p165
      %p167 = scmp.ne.s32.totalorder %s156, %s159
      %p168 = scmp.eq.s32.totalorder %s20, 1
      %p169 = por %p167, %p168
      %p170 = scmp.ne.s32.totalorder %s159, %s160
      %p171 = scmp.eq.s32.totalorder %s20, 0
      %p172 = por %p170, %p171
      %p173 = scmp.ne.s32.totalorder %s159, %s160
      %p174 = scmp.eq.s32.totalorder %s21, 1
      %p175 = por %p173, %p174
      %p177 = scmp.ne.s32.totalorder %s160, %s176
      %p178 = scmp.eq.s32.totalorder %s21, 0
      %p179 = por %p177, %p178
      %p180 = scmp.le.s32.totalorder 1, %s15
      %p181 = scmp.lt.s32.totalorder %s15, 3
      %p182 = pnand %p180, %p181
      %p183 = pneg %p182
      // Predicated region
      $region9: #{tpu_custom_call.1} parent=5 // pred_check
        _
      $region10: #{tpu_custom_call.1} parent=5 // pred_check_branch
        %185 = sbr.rel (%p182) target = $region12
      $region11: #{tpu_custom_call.1} parent=5 // pred_region
        %s186 = ssub.s32 %s15, 1
        // Predicated region
        $region13: #{tpu_custom_call.1} parent=11 // pred_check
          %p187 = pneg %p62
        $region14: #{tpu_custom_call.1} parent=11 // pred_check_branch
          %189 = sbr.rel (%p187) target = $region16
        $region15: #{tpu_custom_call.1} parent=11 // pred_region
          _
        $region16: #{tpu_custom_call.1} parent=11 // pred_fallthru
          _
        // Predicated region
        $region17: #{tpu_custom_call.1} parent=11 // pred_check
          %p190 = pneg %p83
        $region18: #{tpu_custom_call.1} parent=11 // pred_check_branch
          %192 = sbr.rel (%p190) target = $region20
        $region19: #{tpu_custom_call.1} parent=11 // pred_region
          _
        $region20: #{tpu_custom_call.1} parent=11 // pred_fallthru
          _
        // Predicated region
        $region21: #{tpu_custom_call.1} parent=11 // pred_check
          %p193 = pneg %p104
        $region22: #{tpu_custom_call.1} parent=11 // pred_check_branch
          %195 = sbr.rel (%p193) target = $region24
        $region23: #{tpu_custom_call.1} parent=11 // pred_region
          _
        $region24: #{tpu_custom_call.1} parent=11 // pred_fallthru
          _
        // Predicated region
        $region25: #{tpu_custom_call.1} parent=11 // pred_check
          %p196 = pneg %p125
        $region26: #{tpu_custom_call.1} parent=11 // pred_check_branch
          %198 = sbr.rel (%p196) target = $region28
        $region27: #{tpu_custom_call.1} parent=11 // pred_region
          _
        $region28: #{tpu_custom_call.1} parent=11 // pred_fallthru
          _
        // Predicated region
        $region29: #{tpu_custom_call.1} parent=11 // pred_check
          %p199 = pneg %p146
        $region30: #{tpu_custom_call.1} parent=11 // pred_check_branch
          %201 = sbr.rel (%p199) target = $region32
        $region31: #{tpu_custom_call.1} parent=11 // pred_region
          _
        $region32: #{tpu_custom_call.1} parent=11 // pred_fallthru
          _
      $region12: #{tpu_custom_call.1} parent=5 // pred_fallthru
        _
      %p202 = scmp.lt.s32.totalorder %s15, 2
      // Predicated region
      $region33: #{tpu_custom_call.1} parent=5 // pred_check
        %p203 = pneg %p202
      $region34: #{tpu_custom_call.1} parent=5 // pred_check_branch
        %205 = sbr.rel (%p203) target = $region36
      $region35: #{tpu_custom_call.1} parent=5 // pred_region
        // Predicated region
        $region37: #{tpu_custom_call.1} parent=35 // pred_check
          %p206 = pneg %p35
        $region38: #{tpu_custom_call.1} parent=35 // pred_check_branch
          %208 = sbr.rel (%p206) target = $region40
        $region39: #{tpu_custom_call.1} parent=35 // pred_region
          %p209 = scmp.lt.s32.totalorder %s15, 1
          %s210 = scalar_select %p209, %s15, 1
          %s211 = smul.addr %s210, 2
          %s212 = smul.addr %s211, 8
          %s213 = scalar_lea.vmem %s0, %s212
        $region40: #{tpu_custom_call.1} parent=35 // pred_fallthru
          _
      $region36: #{tpu_custom_call.1} parent=5 // pred_fallthru
        _
      %p214 = scmp.le.s32.totalorder 1, %s15
      %p215 = scmp.lt.s32.totalorder %s15, 3
      %p216 = pnand %p214, %p215
      %p217 = pneg %p216
      // Predicated region
      $region41: #{tpu_custom_call.1} parent=5 // pred_check
        _
      $region42: #{tpu_custom_call.1} parent=5 // pred_check_branch
        %219 = sbr.rel (%p216) target = $region44
      $region43: #{tpu_custom_call.1} parent=5 // pred_region
        %s220 = ssub.s32 %s15, 1
        %p221 = scmp.lt.s32.totalorder %s20, 1
        %s222 = scalar_select %p221, %s20, 1
        %s223 = smul.addr %s222, 2
        %s224 = smul.addr %s223, 8
        %s225 = scalar_lea.vmem %s0, %s224
        %p226 = pneg %p41
        %p227 = pneg %p38
        %p228 = pneg %p62
        %p229 = pneg %p59
        %p230 = pneg %p83
        %p231 = pneg %p80
        %p232 = pneg %p104
        %p233 = pneg %p101
        %p234 = pneg %p125
        %p235 = pneg %p122
        %p236 = pneg %p146
        %p237 = pneg %p143
        %p238 = pneg %p172
        %p239 = pneg %p169
        %s240 = sand.u32 %s159, 1
        %s241 = scalar_lea.sflag [#allocation3], %s240
        %s242 = sand.u32 %s159, 1
        %s243 = smul.addr %s242, 16
        %s244 = scalar_lea.vmem [#allocation2], %s243
        %p245 = scmp.lt.s32.totalorder %s20, 1
        %s246 = scalar_select %p245, %s20, 1
        %s247 = smul.addr %s246, 2
        %s248 = smul.addr %s247, 8
        %s249 = scalar_lea.vmem %s0, %s248
        %v251 = vld [vmem:[%s249] sm:$0xff]
        %v252 = vld [vmem:[%s249 + $0x8] sm:$0xff]
        %v253 = vld [vmem:[%s1] sm:$0xff]
        %v254 = vld [vmem:[%s1 + $0x8] sm:$0xff]
        %255 = vrot.lane.b32.xlu0 %v251, 17
        %v256 = vpop.permute.xlu0 %255
        %257 = vrot.lane.b32.xlu0 %v252, 17
        %v258 = vpop.permute.xlu0 %257
        %v259 = vlaneseq
        %v260 = vand.u32 %v259, 127
        %vm261 = vcmp.lt.s32.totalorder %v260, 17
        %v262 = vsel %vm261, %v256, %v258
        %v263 = vsel %vm261, %v258, %v256
        %v264 = vlaneseq
        %v265 = vshrl.u32 %v264, 7
        %v266 = vsub.s32 0, %v265
        %v267 = vrot.slane %v253, %v266
        %v268 = vlaneseq
        %v269 = vshrl.u32 %v268, 7
        %v270 = vsub.s32 0, %v269
        %v271 = vrot.slane %v254, %v270
        %v272 = vmul.f32 %v263, %v267
        %v273 = vmul.f32 %v262, %v271
        %v274 = vld [vmem:[%s2] sm:$0xf]
        %v275 = vpack.c.bf16 %v272, %v272
        %v276 = vpack.c.bf16 %v273, %v273
        %277 = vrot.lane.b32.xlu0 %v251, 16
        %v278 = vpop.permute.xlu0 %277
        %279 = vrot.lane.b32.xlu0 %v252, 16
        %v280 = vpop.permute.xlu0 %279
        %vm281 = vcmp.lt.s32.totalorder %v260, 16
        %v282 = vsel %vm281, %v278, %v280
        %v283 = vsel %vm281, %v280, %v278
        %v284 = vlaneseq
        %v285 = vshrl.u32 %v284, 7
        %v286 = vsub.s32 1, %v285
        %v287 = vrot.slane %v253, %v286
        %v288 = vlaneseq
        %v289 = vshrl.u32 %v288, 7
        %v290 = vsub.s32 1, %v289
        %v291 = vrot.slane %v254, %v290
        %v292 = vmul.f32 %v283, %v287
        %v293 = vmul.f32 %v282, %v291
        %s294 = scalar_lea.vmem %s2, 4
        %v295 = vld [vmem:[%s294] sm:$0xf]
        %v296 = vpack.c.bf16 %v292, %v292
        %v297 = vpack.c.bf16 %v293, %v293
        %vm298 = vcmask 64512
        %v300 = vsel %vm298, %v295, 0
        %vm302 = vcmask 1043456
        %v304 = vsel %vm302, %v296, 0
        %v307 = vsel %vm302, %v297, 0
        %309 = vmatprep.subr.bf16.mxu0 0
        %310 = vmatpush1.bf16.msra.mxu0 0
        %311 = vmatprep.subr.bf16.mxu0 0
        %312 = vmatpush1.bf16.msra.mxu0 0
        %313 = vmatprep.subr.bf16.mxu0 0
        %314 = vmatpush1.bf16.msra.mxu0 0
        %315 = vmatprep.subr.bf16.mxu0 0
        %316 = vmatpush1.bf16.msra.mxu0 0
        %317 = vmatprep.subr.bf16.mxu0 0
        %318 = vmatpush1.bf16.msra.mxu0 0
        %319 = vmatprep.subr.bf16.mxu0 0
        %320 = vmatpush1.bf16.msra.mxu0 0
        %321 = vmatprep.subr.bf16.mxu0 0
        %322 = vmatpush1.bf16.msra.mxu0 0
        %323 = vmatprep.subr.bf16.mxu0 %v307
        %324 = vmatpush1.bf16.msra.mxu0 %v304
        %325 = vmatprep.subr.bf16.mxu0 0
        %326 = vmatpush2.bf16.msra.mxu0 0
        %327 = vmatprep.subr.bf16.mxu0 0
        %328 = vmatpush2.bf16.msra.mxu0 0
        %329 = vmatprep.subr.bf16.mxu0 0
        %330 = vmatpush2.bf16.msra.mxu0 0
        %331 = vmatprep.subr.bf16.mxu0 0
        %332 = vmatpush2.bf16.msra.mxu0 0
        %333 = vmatprep.subr.bf16.mxu0 0
        %334 = vmatpush2.bf16.msra.mxu0 0
        %335 = vmatprep.subr.bf16.mxu0 0
        %336 = vmatpush2.bf16.msra.mxu0 0
        %337 = vmatprep.subr.bf16.mxu0 0
        %338 = vmatpush2.bf16.msra.mxu0 0
        %339 = vmatprep.subr.bf16.mxu0 0
        %340 = vmatpush2.bf16.msra.mxu0 0
        %341 = vmatprep.mubr.bf16.mxu0 0
        %342 = vmatmul.mubr.bf16.gmra.mxu0 %v300
        %v343 = vpop.f32.mrf.mxu0
        %v344 = vadd.f32 0.0, %v343
        %v345 = vpop.f32.mrf.mxu0
        %v346 = vadd.f32 0.0, %v345
        %v347 = vpop.f32.mrf.mxu0
        %v348 = vpop.f32.mrf.mxu0
        %349 = vdwg.mxu0
        %v351 = vsel %vm298, %v274, 0
        %v354 = vsel %vm302, %v275, 0
        %v357 = vsel %vm302, %v276, 0
        %359 = vmatprep.subr.bf16.mxu0 0
        %360 = vmatpush1.bf16.msra.mxu0 0
        %361 = vmatprep.subr.bf16.mxu0 0
        %362 = vmatpush1.bf16.msra.mxu0 0
        %363 = vmatprep.subr.bf16.mxu0 0
        %364 = vmatpush1.bf16.msra.mxu0 0
        %365 = vmatprep.subr.bf16.mxu0 0
        %366 = vmatpush1.bf16.msra.mxu0 0
        %367 = vmatprep.subr.bf16.mxu0 0
        %368 = vmatpush1.bf16.msra.mxu0 0
        %369 = vmatprep.subr.bf16.mxu0 0
        %370 = vmatpush1.bf16.msra.mxu0 0
        %371 = vmatprep.subr.bf16.mxu0 0
        %372 = vmatpush1.bf16.msra.mxu0 0
        %373 = vmatprep.subr.bf16.mxu0 %v357
        %374 = vmatpush1.bf16.msra.mxu0 %v354
        %375 = vmatprep.subr.bf16.mxu0 0
        %376 = vmatpush2.bf16.msra.mxu0 0
        %377 = vmatprep.subr.bf16.mxu0 0
        %378 = vmatpush2.bf16.msra.mxu0 0
        %379 = vmatprep.subr.bf16.mxu0 0
        %380 = vmatpush2.bf16.msra.mxu0 0
        %381 = vmatprep.subr.bf16.mxu0 0
        %382 = vmatpush2.bf16.msra.mxu0 0
        %383 = vmatprep.subr.bf16.mxu0 0
        %384 = vmatpush2.bf16.msra.mxu0 0
        %385 = vmatprep.subr.bf16.mxu0 0
        %386 = vmatpush2.bf16.msra.mxu0 0
        %387 = vmatprep.subr.bf16.mxu0 0
        %388 = vmatpush2.bf16.msra.mxu0 0
        %389 = vmatprep.subr.bf16.mxu0 0
        %390 = vmatpush2.bf16.msra.mxu0 0
        %391 = vmatprep.mubr.bf16.mxu0 0
        %392 = vmatmul.mubr.bf16.gmra.mxu0 %v351
        %v393 = vpop.f32.mrf.mxu0
        %v394 = vadd.f32 %v344, %v393
        %v395 = vpop.f32.mrf.mxu0
        %v396 = vadd.f32 %v346, %v395
        %v397 = vpop.f32.mrf.mxu0
        %v398 = vpop.f32.mrf.mxu0
        %399 = vdwg.mxu0
        %400 = vrot.lane.b32.xlu0 %v251, 15
        %v401 = vpop.permute.xlu0 %400
        %402 = vrot.lane.b32.xlu0 %v252, 15
        %v403 = vpop.permute.xlu0 %402
        %vm404 = vcmp.lt.s32.totalorder %v260, 15
        %v405 = vsel %vm404, %v401, %v403
        %v406 = vsel %vm404, %v403, %v401
        %v407 = vlaneseq
        %v408 = vshrl.u32 %v407, 7
        %v409 = vsub.s32 2, %v408
        %v410 = vrot.slane %v253, %v409
        %v411 = vlaneseq
        %v412 = vshrl.u32 %v411, 7
        %v413 = vsub.s32 2, %v412
        %v414 = vrot.slane %v254, %v413
        %v415 = vmul.f32 %v406, %v410
        %v416 = vmul.f32 %v405, %v414
        %s417 = scalar_lea.vmem %s2, 8
        %v418 = vld [vmem:[%s417] sm:$0xf]
        %v419 = vpack.c.bf16 %v415, %v415
        %v420 = vpack.c.bf16 %v416, %v416
        %v422 = vsel %vm298, %v418, 0
        %v425 = vsel %vm302, %v419, 0
        %v428 = vsel %vm302, %v420, 0
        %430 = vmatprep.subr.bf16.mxu0 0
        %431 = vmatpush1.bf16.msra.mxu0 0
        %432 = vmatprep.subr.bf16.mxu0 0
        %433 = vmatpush1.bf16.msra.mxu0 0
        %434 = vmatprep.subr.bf16.mxu0 0
        %435 = vmatpush1.bf16.msra.mxu0 0
        %436 = vmatprep.subr.bf16.mxu0 0
        %437 = vmatpush1.bf16.msra.mxu0 0
        %438 = vmatprep.subr.bf16.mxu0 0
        %439 = vmatpush1.bf16.msra.mxu0 0
        %440 = vmatprep.subr.bf16.mxu0 0
        %441 = vmatpush1.bf16.msra.mxu0 0
        %442 = vmatprep.subr.bf16.mxu0 0
        %443 = vmatpush1.bf16.msra.mxu0 0
        %444 = vmatprep.subr.bf16.mxu0 %v428
        %445 = vmatpush1.bf16.msra.mxu0 %v425
        %446 = vmatprep.subr.bf16.mxu0 0
        %447 = vmatpush2.bf16.msra.mxu0 0
        %448 = vmatprep.subr.bf16.mxu0 0
        %449 = vmatpush2.bf16.msra.mxu0 0
        %450 = vmatprep.subr.bf16.mxu0 0
        %451 = vmatpush2.bf16.msra.mxu0 0
        %452 = vmatprep.subr.bf16.mxu0 0
        %453 = vmatpush2.bf16.msra.mxu0 0
        %454 = vmatprep.subr.bf16.mxu0 0
        %455 = vmatpush2.bf16.msra.mxu0 0
        %456 = vmatprep.subr.bf16.mxu0 0
        %457 = vmatpush2.bf16.msra.mxu0 0
        %458 = vmatprep.subr.bf16.mxu0 0
        %459 = vmatpush2.bf16.msra.mxu0 0
        %460 = vmatprep.subr.bf16.mxu0 0
        %461 = vmatpush2.bf16.msra.mxu0 0
        %462 = vmatprep.mubr.bf16.mxu0 0
        %463 = vmatmul.mubr.bf16.gmra.mxu0 %v422
        %v464 = vpop.f32.mrf.mxu0
        %v465 = vadd.f32 0.0, %v464
        %v466 = vpop.f32.mrf.mxu0
        %v467 = vadd.f32 0.0, %v466
        %v468 = vpop.f32.mrf.mxu0
        %v469 = vpop.f32.mrf.mxu0
        %470 = vdwg.mxu0
        %v471 = vadd.f32 %v394, %v465
        %v472 = vadd.f32 %v396, %v467
        %473 = vrot.lane.b32.xlu0 %v251, 1
        %v474 = vpop.permute.xlu0 %473
        %475 = vrot.lane.b32.xlu0 %v252, 1
        %v476 = vpop.permute.xlu0 %475
        %vm477 = vcmp.lt.s32.totalorder %v260, 1
        %v478 = vsel %vm477, %v474, %v476
        %v479 = vsel %vm477, %v476, %v474
        %v480 = vlaneseq
        %v481 = vshrl.u32 %v480, 7
        %v482 = vsub.s32 3, %v481
        %v483 = vrot.slane %v253, %v482
        %v484 = vlaneseq
        %v485 = vshrl.u32 %v484, 7
        %v486 = vsub.s32 3, %v485
        %v487 = vrot.slane %v254, %v486
        %v488 = vmul.f32 %v479, %v483
        %v489 = vmul.f32 %v478, %v487
        %s490 = scalar_lea.vmem %s2, 12
        %v491 = vld [vmem:[%s490] sm:$0xf]
        %v492 = vpack.c.bf16 %v488, %v488
        %v493 = vpack.c.bf16 %v489, %v489
        %v495 = vsel %vm298, %v491, 0
        %v498 = vsel %vm302, %v492, 0
        %v501 = vsel %vm302, %v493, 0
        %503 = vmatprep.subr.bf16.mxu0 0
        %504 = vmatpush1.bf16.msra.mxu0 0
        %505 = vmatprep.subr.bf16.mxu0 0
        %506 = vmatpush1.bf16.msra.mxu0 0
        %507 = vmatprep.subr.bf16.mxu0 0
        %508 = vmatpush1.bf16.msra.mxu0 0
        %509 = vmatprep.subr.bf16.mxu0 0
        %510 = vmatpush1.bf16.msra.mxu0 0
        %511 = vmatprep.subr.bf16.mxu0 0
        %512 = vmatpush1.bf16.msra.mxu0 0
        %513 = vmatprep.subr.bf16.mxu0 0
        %514 = vmatpush1.bf16.msra.mxu0 0
        %515 = vmatprep.subr.bf16.mxu0 0
        %516 = vmatpush1.bf16.msra.mxu0 0
        %517 = vmatprep.subr.bf16.mxu0 %v501
        %518 = vmatpush1.bf16.msra.mxu0 %v498
        %519 = vmatprep.subr.bf16.mxu0 0
        %520 = vmatpush2.bf16.msra.mxu0 0
        %521 = vmatprep.subr.bf16.mxu0 0
        %522 = vmatpush2.bf16.msra.mxu0 0
        %523 = vmatprep.subr.bf16.mxu0 0
        %524 = vmatpush2.bf16.msra.mxu0 0
        %525 = vmatprep.subr.bf16.mxu0 0
        %526 = vmatpush2.bf16.msra.mxu0 0
        %527 = vmatprep.subr.bf16.mxu0 0
        %528 = vmatpush2.bf16.msra.mxu0 0
        %529 = vmatprep.subr.bf16.mxu0 0
        %530 = vmatpush2.bf16.msra.mxu0 0
        %531 = vmatprep.subr.bf16.mxu0 0
        %532 = vmatpush2.bf16.msra.mxu0 0
        %533 = vmatprep.subr.bf16.mxu0 0
        %534 = vmatpush2.bf16.msra.mxu0 0
        %535 = vmatprep.mubr.bf16.mxu0 0
        %536 = vmatmul.mubr.bf16.gmra.mxu0 %v495
        %v537 = vpop.f32.mrf.mxu0
        %v538 = vadd.f32 0.0, %v537
        %v539 = vpop.f32.mrf.mxu0
        %v540 = vadd.f32 0.0, %v539
        %v541 = vpop.f32.mrf.mxu0
        %v542 = vpop.f32.mrf.mxu0
        %543 = vdwg.mxu0
        %v544 = vadd.f32 %v471, %v538
        %v545 = vadd.f32 %v472, %v540
        %s546 = scalar_lea.vmem %s2, 16
        %v547 = vld [vmem:[%s546] sm:$0xf]
        %v548 = vpack.c.bf16 %v251, %v251
        %v549 = vpack.c.bf16 %v252, %v252
        %v551 = vsel %vm298, %v547, 0
        %v554 = vsel %vm302, %v548, 0
        %v557 = vsel %vm302, %v549, 0
        %559 = vmatprep.subr.bf16.mxu0 0
        %560 = vmatpush1.bf16.msra.mxu0 0
        %561 = vmatprep.subr.bf16.mxu0 0
        %562 = vmatpush1.bf16.msra.mxu0 0
        %563 = vmatprep.subr.bf16.mxu0 0
        %564 = vmatpush1.bf16.msra.mxu0 0
        %565 = vmatprep.subr.bf16.mxu0 0
        %566 = vmatpush1.bf16.msra.mxu0 0
        %567 = vmatprep.subr.bf16.mxu0 0
        %568 = vmatpush1.bf16.msra.mxu0 0
        %569 = vmatprep.subr.bf16.mxu0 0
        %570 = vmatpush1.bf16.msra.mxu0 0
        %571 = vmatprep.subr.bf16.mxu0 0
        %572 = vmatpush1.bf16.msra.mxu0 0
        %573 = vmatprep.subr.bf16.mxu0 %v557
        %574 = vmatpush1.bf16.msra.mxu0 %v554
        %575 = vmatprep.subr.bf16.mxu0 0
        %576 = vmatpush2.bf16.msra.mxu0 0
        %577 = vmatprep.subr.bf16.mxu0 0
        %578 = vmatpush2.bf16.msra.mxu0 0
        %579 = vmatprep.subr.bf16.mxu0 0
        %580 = vmatpush2.bf16.msra.mxu0 0
        %581 = vmatprep.subr.bf16.mxu0 0
        %582 = vmatpush2.bf16.msra.mxu0 0
        %583 = vmatprep.subr.bf16.mxu0 0
        %584 = vmatpush2.bf16.msra.mxu0 0
        %585 = vmatprep.subr.bf16.mxu0 0
        %586 = vmatpush2.bf16.msra.mxu0 0
        %587 = vmatprep.subr.bf16.mxu0 0
        %588 = vmatpush2.bf16.msra.mxu0 0
        %589 = vmatprep.subr.bf16.mxu0 0
        %590 = vmatpush2.bf16.msra.mxu0 0
        %591 = vmatprep.mubr.bf16.mxu0 0
        %592 = vmatmul.mubr.bf16.gmra.mxu0 %v551
        %v593 = vpop.f32.mrf.mxu0
        %v594 = vadd.f32 0.0, %v593
        %v595 = vpop.f32.mrf.mxu0
        %v596 = vadd.f32 0.0, %v595
        %v597 = vpop.f32.mrf.mxu0
        %v598 = vpop.f32.mrf.mxu0
        %599 = vdwg.mxu0
        %v600 = vadd.f32 %v544, %v594
        %v601 = vadd.f32 %v545, %v596
        %602 = vrot.lane.b32.xlu0 %v251, 127
        %v603 = vpop.permute.xlu0 %602
        %604 = vrot.lane.b32.xlu0 %v252, 127
        %v605 = vpop.permute.xlu0 %604
        %vm606 = vcmp.lt.s32.totalorder %v260, 127
        %v607 = vsel %vm606, %v603, %v605
        %v608 = vsel %vm606, %v605, %v603
        %v609 = vlaneseq
        %v610 = vshrl.u32 %v609, 7
        %v611 = vsub.s32 4, %v610
        %v612 = vrot.slane %v253, %v611
        %v613 = vlaneseq
        %v614 = vshrl.u32 %v613, 7
        %v615 = vsub.s32 4, %v614
        %v616 = vrot.slane %v254, %v615
        %v617 = vmul.f32 %v607, %v612
        %v618 = vmul.f32 %v608, %v616
        %s619 = scalar_lea.vmem %s2, 20
        %v620 = vld [vmem:[%s619] sm:$0xf]
        %v621 = vpack.c.bf16 %v617, %v617
        %v622 = vpack.c.bf16 %v618, %v618
        %v624 = vsel %vm298, %v620, 0
        %v627 = vsel %vm302, %v621, 0
        %v630 = vsel %vm302, %v622, 0
        %632 = vmatprep.subr.bf16.mxu0 0
        %633 = vmatpush1.bf16.msra.mxu0 0
        %634 = vmatprep.subr.bf16.mxu0 0
        %635 = vmatpush1.bf16.msra.mxu0 0
        %636 = vmatprep.subr.bf16.mxu0 0
        %637 = vmatpush1.bf16.msra.mxu0 0
        %638 = vmatprep.subr.bf16.mxu0 0
        %639 = vmatpush1.bf16.msra.mxu0 0
        %640 = vmatprep.subr.bf16.mxu0 0
        %641 = vmatpush1.bf16.msra.mxu0 0
        %642 = vmatprep.subr.bf16.mxu0 0
        %643 = vmatpush1.bf16.msra.mxu0 0
        %644 = vmatprep.subr.bf16.mxu0 0
        %645 = vmatpush1.bf16.msra.mxu0 0
        %646 = vmatprep.subr.bf16.mxu0 %v630
        %647 = vmatpush1.bf16.msra.mxu0 %v627
        %648 = vmatprep.subr.bf16.mxu0 0
        %649 = vmatpush2.bf16.msra.mxu0 0
        %650 = vmatprep.subr.bf16.mxu0 0
        %651 = vmatpush2.bf16.msra.mxu0 0
        %652 = vmatprep.subr.bf16.mxu0 0
        %653 = vmatpush2.bf16.msra.mxu0 0
        %654 = vmatprep.subr.bf16.mxu0 0
        %655 = vmatpush2.bf16.msra.mxu0 0
        %656 = vmatprep.subr.bf16.mxu0 0
        %657 = vmatpush2.bf16.msra.mxu0 0
        %658 = vmatprep.subr.bf16.mxu0 0
        %659 = vmatpush2.bf16.msra.mxu0 0
        %660 = vmatprep.subr.bf16.mxu0 0
        %661 = vmatpush2.bf16.msra.mxu0 0
        %662 = vmatprep.subr.bf16.mxu0 0
        %663 = vmatpush2.bf16.msra.mxu0 0
        %664 = vmatprep.mubr.bf16.mxu0 0
        %665 = vmatmul.mubr.bf16.gmra.mxu0 %v624
        %v666 = vpop.f32.mrf.mxu0
        %v667 = vadd.f32 0.0, %v666
        %v668 = vpop.f32.mrf.mxu0
        %v669 = vadd.f32 0.0, %v668
        %v670 = vpop.f32.mrf.mxu0
        %v671 = vpop.f32.mrf.mxu0
        %672 = vdwg.mxu0
        %v673 = vadd.f32 %v600, %v667
        %v674 = vadd.f32 %v601, %v669
        %675 = vrot.lane.b32.xlu0 %v251, 113
        %v676 = vpop.permute.xlu0 %675
        %677 = vrot.lane.b32.xlu0 %v252, 113
        %v678 = vpop.permute.xlu0 %677
        %vm679 = vcmp.lt.s32.totalorder %v260, 113
        %v680 = vsel %vm679, %v676, %v678
        %v681 = vsel %vm679, %v678, %v676
        %v682 = vlaneseq
        %v683 = vshrl.u32 %v682, 7
        %v684 = vsub.s32 5, %v683
        %v685 = vrot.slane %v253, %v684
        %v686 = vlaneseq
        %v687 = vshrl.u32 %v686, 7
        %v688 = vsub.s32 5, %v687
        %v689 = vrot.slane %v254, %v688
        %v690 = vmul.f32 %v680, %v685
        %v691 = vmul.f32 %v681, %v689
        %s692 = scalar_lea.vmem %s2, 24
        %v693 = vld [vmem:[%s692] sm:$0xf]
        %v694 = vpack.c.bf16 %v690, %v690
        %v695 = vpack.c.bf16 %v691, %v691
        %v697 = vsel %vm298, %v693, 0
        %v700 = vsel %vm302, %v694, 0
        %v703 = vsel %vm302, %v695, 0
        %705 = vmatprep.subr.bf16.mxu0 0
        %706 = vmatpush1.bf16.msra.mxu0 0
        %707 = vmatprep.subr.bf16.mxu0 0
        %708 = vmatpush1.bf16.msra.mxu0 0
        %709 = vmatprep.subr.bf16.mxu0 0
        %710 = vmatpush1.bf16.msra.mxu0 0
        %711 = vmatprep.subr.bf16.mxu0 0
        %712 = vmatpush1.bf16.msra.mxu0 0
        %713 = vmatprep.subr.bf16.mxu0 0
        %714 = vmatpush1.bf16.msra.mxu0 0
        %715 = vmatprep.subr.bf16.mxu0 0
        %716 = vmatpush1.bf16.msra.mxu0 0
        %717 = vmatprep.subr.bf16.mxu0 0
        %718 = vmatpush1.bf16.msra.mxu0 0
        %719 = vmatprep.subr.bf16.mxu0 %v703
        %720 = vmatpush1.bf16.msra.mxu0 %v700
        %721 = vmatprep.subr.bf16.mxu0 0
        %722 = vmatpush2.bf16.msra.mxu0 0
        %723 = vmatprep.subr.bf16.mxu0 0
        %724 = vmatpush2.bf16.msra.mxu0 0
        %725 = vmatprep.subr.bf16.mxu0 0
        %726 = vmatpush2.bf16.msra.mxu0 0
        %727 = vmatprep.subr.bf16.mxu0 0
        %728 = vmatpush2.bf16.msra.mxu0 0
        %729 = vmatprep.subr.bf16.mxu0 0
        %730 = vmatpush2.bf16.msra.mxu0 0
        %731 = vmatprep.subr.bf16.mxu0 0
        %732 = vmatpush2.bf16.msra.mxu0 0
        %733 = vmatprep.subr.bf16.mxu0 0
        %734 = vmatpush2.bf16.msra.mxu0 0
        %735 = vmatprep.subr.bf16.mxu0 0
        %736 = vmatpush2.bf16.msra.mxu0 0
        %737 = vmatprep.mubr.bf16.mxu0 0
        %738 = vmatmul.mubr.bf16.gmra.mxu0 %v697
        %v739 = vpop.f32.mrf.mxu0
        %v740 = vadd.f32 0.0, %v739
        %v741 = vpop.f32.mrf.mxu0
        %v742 = vadd.f32 0.0, %v741
        %v743 = vpop.f32.mrf.mxu0
        %v744 = vpop.f32.mrf.mxu0
        %745 = vdwg.mxu0
        %v746 = vadd.f32 %v673, %v740
        %v747 = vadd.f32 %v674, %v742
        %748 = vrot.lane.b32.xlu0 %v251, 112
        %v749 = vpop.permute.xlu0 %748
        %750 = vrot.lane.b32.xlu0 %v252, 112
        %v751 = vpop.permute.xlu0 %750
        %vm752 = vcmp.lt.s32.totalorder %v260, 112
        %v753 = vsel %vm752, %v749, %v751
        %v754 = vsel %vm752, %v751, %v749
        %v755 = vlaneseq
        %v756 = vshrl.u32 %v755, 7
        %v757 = vsub.s32 6, %v756
        %v758 = vrot.slane %v253, %v757
        %v759 = vlaneseq
        %v760 = vshrl.u32 %v759, 7
        %v761 = vsub.s32 6, %v760
        %v762 = vrot.slane %v254, %v761
        %v763 = vmul.f32 %v753, %v758
        %v764 = vmul.f32 %v754, %v762
        %s765 = scalar_lea.vmem %s2, 28
        %v766 = vld [vmem:[%s765] sm:$0xf]
        %v767 = vpack.c.bf16 %v763, %v763
        %v768 = vpack.c.bf16 %v764, %v764
        %v770 = vsel %vm298, %v766, 0
        %v773 = vsel %vm302, %v767, 0
        %v776 = vsel %vm302, %v768, 0
        %778 = vmatprep.subr.bf16.mxu0 0
        %779 = vmatpush1.bf16.msra.mxu0 0
        %780 = vmatprep.subr.bf16.mxu0 0
        %781 = vmatpush1.bf16.msra.mxu0 0
        %782 = vmatprep.subr.bf16.mxu0 0
        %783 = vmatpush1.bf16.msra.mxu0 0
        %784 = vmatprep.subr.bf16.mxu0 0
        %785 = vmatpush1.bf16.msra.mxu0 0
        %786 = vmatprep.subr.bf16.mxu0 0
        %787 = vmatpush1.bf16.msra.mxu0 0
        %788 = vmatprep.subr.bf16.mxu0 0
        %789 = vmatpush1.bf16.msra.mxu0 0
        %790 = vmatprep.subr.bf16.mxu0 0
        %791 = vmatpush1.bf16.msra.mxu0 0
        %792 = vmatprep.subr.bf16.mxu0 %v776
        %793 = vmatpush1.bf16.msra.mxu0 %v773
        %794 = vmatprep.subr.bf16.mxu0 0
        %795 = vmatpush2.bf16.msra.mxu0 0
        %796 = vmatprep.subr.bf16.mxu0 0
        %797 = vmatpush2.bf16.msra.mxu0 0
        %798 = vmatprep.subr.bf16.mxu0 0
        %799 = vmatpush2.bf16.msra.mxu0 0
        %800 = vmatprep.subr.bf16.mxu0 0
        %801 = vmatpush2.bf16.msra.mxu0 0
        %802 = vmatprep.subr.bf16.mxu0 0
        %803 = vmatpush2.bf16.msra.mxu0 0
        %804 = vmatprep.subr.bf16.mxu0 0
        %805 = vmatpush2.bf16.msra.mxu0 0
        %806 = vmatprep.subr.bf16.mxu0 0
        %807 = vmatpush2.bf16.msra.mxu0 0
        %808 = vmatprep.subr.bf16.mxu0 0
        %809 = vmatpush2.bf16.msra.mxu0 0
        %810 = vmatprep.mubr.bf16.mxu0 0
        %811 = vmatmul.mubr.bf16.gmra.mxu0 %v770
        %v812 = vpop.f32.mrf.mxu0
        %v813 = vadd.f32 0.0, %v812
        %v814 = vpop.f32.mrf.mxu0
        %v815 = vadd.f32 0.0, %v814
        %v816 = vpop.f32.mrf.mxu0
        %v817 = vpop.f32.mrf.mxu0
        %818 = vdwg.mxu0
        %v819 = vadd.f32 %v746, %v813
        %v820 = vadd.f32 %v747, %v815
        %821 = vrot.lane.b32.xlu0 %v251, 111
        %v822 = vpop.permute.xlu0 %821
        %823 = vrot.lane.b32.xlu0 %v252, 111
        %v824 = vpop.permute.xlu0 %823
        %vm825 = vcmp.lt.s32.totalorder %v260, 111
        %v826 = vsel %vm825, %v822, %v824
        %v827 = vsel %vm825, %v824, %v822
        %v828 = vlaneseq
        %v829 = vshrl.u32 %v828, 7
        %v830 = vsub.s32 7, %v829
        %v831 = vrot.slane %v253, %v830
        %v832 = vlaneseq
        %v833 = vshrl.u32 %v832, 7
        %v834 = vsub.s32 7, %v833
        %v835 = vrot.slane %v254, %v834
        %v836 = vmul.f32 %v826, %v831
        %v837 = vmul.f32 %v827, %v835
        %s838 = scalar_lea.vmem %s2, 32
        %v839 = vld [vmem:[%s838] sm:$0xf]
        %v840 = vpack.c.bf16 %v836, %v836
        %v841 = vpack.c.bf16 %v837, %v837
        %v843 = vsel %vm298, %v839, 0
        %v846 = vsel %vm302, %v840, 0
        %v849 = vsel %vm302, %v841, 0
        %851 = vmatprep.subr.bf16.mxu0 0
        %852 = vmatpush1.bf16.msra.mxu0 0
        %853 = vmatprep.subr.bf16.mxu0 0
        %854 = vmatpush1.bf16.msra.mxu0 0
        %855 = vmatprep.subr.bf16.mxu0 0
        %856 = vmatpush1.bf16.msra.mxu0 0
        %857 = vmatprep.subr.bf16.mxu0 0
        %858 = vmatpush1.bf16.msra.mxu0 0
        %859 = vmatprep.subr.bf16.mxu0 0
        %860 = vmatpush1.bf16.msra.mxu0 0
        %861 = vmatprep.subr.bf16.mxu0 0
        %862 = vmatpush1.bf16.msra.mxu0 0
        %863 = vmatprep.subr.bf16.mxu0 0
        %864 = vmatpush1.bf16.msra.mxu0 0
        %865 = vmatprep.subr.bf16.mxu0 %v849
        %866 = vmatpush1.bf16.msra.mxu0 %v846
        %867 = vmatprep.subr.bf16.mxu0 0
        %868 = vmatpush2.bf16.msra.mxu0 0
        %869 = vmatprep.subr.bf16.mxu0 0
        %870 = vmatpush2.bf16.msra.mxu0 0
        %871 = vmatprep.subr.bf16.mxu0 0
        %872 = vmatpush2.bf16.msra.mxu0 0
        %873 = vmatprep.subr.bf16.mxu0 0
        %874 = vmatpush2.bf16.msra.mxu0 0
        %875 = vmatprep.subr.bf16.mxu0 0
        %876 = vmatpush2.bf16.msra.mxu0 0
        %877 = vmatprep.subr.bf16.mxu0 0
        %878 = vmatpush2.bf16.msra.mxu0 0
        %879 = vmatprep.subr.bf16.mxu0 0
        %880 = vmatpush2.bf16.msra.mxu0 0
        %881 = vmatprep.subr.bf16.mxu0 0
        %882 = vmatpush2.bf16.msra.mxu0 0
        %883 = vmatprep.mubr.bf16.mxu0 0
        %884 = vmatmul.mubr.bf16.gmra.mxu0 %v843
        %v885 = vpop.f32.mrf.mxu0
        %v886 = vadd.f32 0.0, %v885
        %v887 = vpop.f32.mrf.mxu0
        %v888 = vadd.f32 0.0, %v887
        %v889 = vpop.f32.mrf.mxu0
        %v890 = vpop.f32.mrf.mxu0
        %891 = vdwg.mxu0
        %v892 = vadd.f32 %v819, %v886
        %v893 = vadd.f32 %v820, %v888
        %v894 = vld [vmem:[%s3] sm:$0xff]
        %896 = vset.pattern.permute.xlu0 0
        %897 = vperm.xlu0 %896, %v894
        %v898 = vpop.permute.xlu0 %897
        %v900 = vadd.f32 %v892, %v898
        %v901 = vadd.f32 %v893, %v898
        %v902 = vmax.f32 %v900, 0.0
        %v903 = vmax.f32 %v901, 0.0
        %904 = vrot.lane.b32.xlu0 %v902, 17
        %v905 = vpop.permute.xlu0 %904
        %906 = vrot.lane.b32.xlu0 %v903, 17
        %v907 = vpop.permute.xlu0 %906
        %v908 = vsel %vm261, %v905, %v907
        %v909 = vsel %vm261, %v907, %v905
        %v910 = vmul.f32 %v909, %v267
        %v911 = vmul.f32 %v908, %v271
        %v912 = vld [vmem:[%s4] sm:$0xf]
        %v913 = vpack.c.bf16 %v910, %v910
        %v914 = vpack.c.bf16 %v911, %v911
        %915 = vrot.lane.b32.xlu0 %v902, 16
        %v916 = vpop.permute.xlu0 %915
        %917 = vrot.lane.b32.xlu0 %v903, 16
        %v918 = vpop.permute.xlu0 %917
        %v919 = vsel %vm281, %v916, %v918
        %v920 = vsel %vm281, %v918, %v916
        %v921 = vmul.f32 %v920, %v287
        %v922 = vmul.f32 %v919, %v291
        %s923 = scalar_lea.vmem %s4, 4
        %v924 = vld [vmem:[%s923] sm:$0xf]
        %v925 = vpack.c.bf16 %v921, %v921
        %v926 = vpack.c.bf16 %v922, %v922
        %v928 = vsel %vm298, %v924, 0
        %v931 = vsel %vm302, %v925, 0
        %v934 = vsel %vm302, %v926, 0
        %936 = vmatprep.subr.bf16.mxu0 0
        %937 = vmatpush1.bf16.msra.mxu0 0
        %938 = vmatprep.subr.bf16.mxu0 0
        %939 = vmatpush1.bf16.msra.mxu0 0
        %940 = vmatprep.subr.bf16.mxu0 0
        %941 = vmatpush1.bf16.msra.mxu0 0
        %942 = vmatprep.subr.bf16.mxu0 0
        %943 = vmatpush1.bf16.msra.mxu0 0
        %944 = vmatprep.subr.bf16.mxu0 0
        %945 = vmatpush1.bf16.msra.mxu0 0
        %946 = vmatprep.subr.bf16.mxu0 0
        %947 = vmatpush1.bf16.msra.mxu0 0
        %948 = vmatprep.subr.bf16.mxu0 0
        %949 = vmatpush1.bf16.msra.mxu0 0
        %950 = vmatprep.subr.bf16.mxu0 %v934
        %951 = vmatpush1.bf16.msra.mxu0 %v931
        %952 = vmatprep.subr.bf16.mxu0 0
        %953 = vmatpush2.bf16.msra.mxu0 0
        %954 = vmatprep.subr.bf16.mxu0 0
        %955 = vmatpush2.bf16.msra.mxu0 0
        %956 = vmatprep.subr.bf16.mxu0 0
        %957 = vmatpush2.bf16.msra.mxu0 0
        %958 = vmatprep.subr.bf16.mxu0 0
        %959 = vmatpush2.bf16.msra.mxu0 0
        %960 = vmatprep.subr.bf16.mxu0 0
        %961 = vmatpush2.bf16.msra.mxu0 0
        %962 = vmatprep.subr.bf16.mxu0 0
        %963 = vmatpush2.bf16.msra.mxu0 0
        %964 = vmatprep.subr.bf16.mxu0 0
        %965 = vmatpush2.bf16.msra.mxu0 0
        %966 = vmatprep.subr.bf16.mxu0 0
        %967 = vmatpush2.bf16.msra.mxu0 0
        %968 = vmatprep.mubr.bf16.mxu0 0
        %969 = vmatmul.mubr.bf16.gmra.mxu0 %v928
        %v970 = vpop.f32.mrf.mxu0
        %v971 = vadd.f32 0.0, %v970
        %v972 = vpop.f32.mrf.mxu0
        %v973 = vadd.f32 0.0, %v972
        %v974 = vpop.f32.mrf.mxu0
        %v975 = vpop.f32.mrf.mxu0
        %976 = vdwg.mxu0
        %v978 = vsel %vm298, %v912, 0
        %v981 = vsel %vm302, %v913, 0
        %v984 = vsel %vm302, %v914, 0
        %986 = vmatprep.subr.bf16.mxu0 0
        %987 = vmatpush1.bf16.msra.mxu0 0
        %988 = vmatprep.subr.bf16.mxu0 0
        %989 = vmatpush1.bf16.msra.mxu0 0
        %990 = vmatprep.subr.bf16.mxu0 0
        %991 = vmatpush1.bf16.msra.mxu0 0
        %992 = vmatprep.subr.bf16.mxu0 0
        %993 = vmatpush1.bf16.msra.mxu0 0
        %994 = vmatprep.subr.bf16.mxu0 0
        %995 = vmatpush1.bf16.msra.mxu0 0
        %996 = vmatprep.subr.bf16.mxu0 0
        %997 = vmatpush1.bf16.msra.mxu0 0
        %998 = vmatprep.subr.bf16.mxu0 0
        %999 = vmatpush1.bf16.msra.mxu0 0
        %1000 = vmatprep.subr.bf16.mxu0 %v984
        %1001 = vmatpush1.bf16.msra.mxu0 %v981
        %1002 = vmatprep.subr.bf16.mxu0 0
        %1003 = vmatpush2.bf16.msra.mxu0 0
        %1004 = vmatprep.subr.bf16.mxu0 0
        %1005 = vmatpush2.bf16.msra.mxu0 0
        %1006 = vmatprep.subr.bf16.mxu0 0
        %1007 = vmatpush2.bf16.msra.mxu0 0
        %1008 = vmatprep.subr.bf16.mxu0 0
        %1009 = vmatpush2.bf16.msra.mxu0 0
        %1010 = vmatprep.subr.bf16.mxu0 0
        %1011 = vmatpush2.bf16.msra.mxu0 0
        %1012 = vmatprep.subr.bf16.mxu0 0
        %1013 = vmatpush2.bf16.msra.mxu0 0
        %1014 = vmatprep.subr.bf16.mxu0 0
        %1015 = vmatpush2.bf16.msra.mxu0 0
        %1016 = vmatprep.subr.bf16.mxu0 0
        %1017 = vmatpush2.bf16.msra.mxu0 0
        %1018 = vmatprep.mubr.bf16.mxu0 0
        %1019 = vmatmul.mubr.bf16.gmra.mxu0 %v978
        %v1020 = vpop.f32.mrf.mxu0
        %v1021 = vadd.f32 %v971, %v1020
        %v1022 = vpop.f32.mrf.mxu0
        %v1023 = vadd.f32 %v973, %v1022
        %v1024 = vpop.f32.mrf.mxu0
        %v1025 = vpop.f32.mrf.mxu0
        %1026 = vdwg.mxu0
        %1027 = vrot.lane.b32.xlu0 %v902, 15
        %v1028 = vpop.permute.xlu0 %1027
        %1029 = vrot.lane.b32.xlu0 %v903, 15
        %v1030 = vpop.permute.xlu0 %1029
        %v1031 = vsel %vm404, %v1028, %v1030
        %v1032 = vsel %vm404, %v1030, %v1028
        %v1033 = vmul.f32 %v1032, %v410
        %v1034 = vmul.f32 %v1031, %v414
        %s1035 = scalar_lea.vmem %s4, 8
        %v1036 = vld [vmem:[%s1035] sm:$0xf]
        %v1037 = vpack.c.bf16 %v1033, %v1033
        %v1038 = vpack.c.bf16 %v1034, %v1034
        %v1040 = vsel %vm298, %v1036, 0
        %v1043 = vsel %vm302, %v1037, 0
        %v1046 = vsel %vm302, %v1038, 0
        %1048 = vmatprep.subr.bf16.mxu0 0
        %1049 = vmatpush1.bf16.msra.mxu0 0
        %1050 = vmatprep.subr.bf16.mxu0 0
        %1051 = vmatpush1.bf16.msra.mxu0 0
        %1052 = vmatprep.subr.bf16.mxu0 0
        %1053 = vmatpush1.bf16.msra.mxu0 0
        %1054 = vmatprep.subr.bf16.mxu0 0
        %1055 = vmatpush1.bf16.msra.mxu0 0
        %1056 = vmatprep.subr.bf16.mxu0 0
        %1057 = vmatpush1.bf16.msra.mxu0 0
        %1058 = vmatprep.subr.bf16.mxu0 0
        %1059 = vmatpush1.bf16.msra.mxu0 0
        %1060 = vmatprep.subr.bf16.mxu0 0
        %1061 = vmatpush1.bf16.msra.mxu0 0
        %1062 = vmatprep.subr.bf16.mxu0 %v1046
        %1063 = vmatpush1.bf16.msra.mxu0 %v1043
        %1064 = vmatprep.subr.bf16.mxu0 0
        %1065 = vmatpush2.bf16.msra.mxu0 0
        %1066 = vmatprep.subr.bf16.mxu0 0
        %1067 = vmatpush2.bf16.msra.mxu0 0
        %1068 = vmatprep.subr.bf16.mxu0 0
        %1069 = vmatpush2.bf16.msra.mxu0 0
        %1070 = vmatprep.subr.bf16.mxu0 0
        %1071 = vmatpush2.bf16.msra.mxu0 0
        %1072 = vmatprep.subr.bf16.mxu0 0
        %1073 = vmatpush2.bf16.msra.mxu0 0
        %1074 = vmatprep.subr.bf16.mxu0 0
        %1075 = vmatpush2.bf16.msra.mxu0 0
        %1076 = vmatprep.subr.bf16.mxu0 0
        %1077 = vmatpush2.bf16.msra.mxu0 0
        %1078 = vmatprep.subr.bf16.mxu0 0
        %1079 = vmatpush2.bf16.msra.mxu0 0
        %1080 = vmatprep.mubr.bf16.mxu0 0
        %1081 = vmatmul.mubr.bf16.gmra.mxu0 %v1040
        %v1082 = vpop.f32.mrf.mxu0
        %v1083 = vadd.f32 0.0, %v1082
        %v1084 = vpop.f32.mrf.mxu0
        %v1085 = vadd.f32 0.0, %v1084
        %v1086 = vpop.f32.mrf.mxu0
        %v1087 = vpop.f32.mrf.mxu0
        %1088 = vdwg.mxu0
        %v1089 = vadd.f32 %v1021, %v1083
        %v1090 = vadd.f32 %v1023, %v1085
        %1091 = vrot.lane.b32.xlu0 %v902, 1
        %v1092 = vpop.permute.xlu0 %1091
        %1093 = vrot.lane.b32.xlu0 %v903, 1
        %v1094 = vpop.permute.xlu0 %1093
        %v1095 = vsel %vm477, %v1092, %v1094
        %v1096 = vsel %vm477, %v1094, %v1092
        %v1097 = vmul.f32 %v1096, %v483
        %v1098 = vmul.f32 %v1095, %v487
        %s1099 = scalar_lea.vmem %s4, 12
        %v1100 = vld [vmem:[%s1099] sm:$0xf]
        %v1101 = vpack.c.bf16 %v1097, %v1097
        %v1102 = vpack.c.bf16 %v1098, %v1098
        %v1104 = vsel %vm298, %v1100, 0
        %v1107 = vsel %vm302, %v1101, 0
        %v1110 = vsel %vm302, %v1102, 0
        %1112 = vmatprep.subr.bf16.mxu0 0
        %1113 = vmatpush1.bf16.msra.mxu0 0
        %1114 = vmatprep.subr.bf16.mxu0 0
        %1115 = vmatpush1.bf16.msra.mxu0 0
        %1116 = vmatprep.subr.bf16.mxu0 0
        %1117 = vmatpush1.bf16.msra.mxu0 0
        %1118 = vmatprep.subr.bf16.mxu0 0
        %1119 = vmatpush1.bf16.msra.mxu0 0
        %1120 = vmatprep.subr.bf16.mxu0 0
        %1121 = vmatpush1.bf16.msra.mxu0 0
        %1122 = vmatprep.subr.bf16.mxu0 0
        %1123 = vmatpush1.bf16.msra.mxu0 0
        %1124 = vmatprep.subr.bf16.mxu0 0
        %1125 = vmatpush1.bf16.msra.mxu0 0
        %1126 = vmatprep.subr.bf16.mxu0 %v1110
        %1127 = vmatpush1.bf16.msra.mxu0 %v1107
        %1128 = vmatprep.subr.bf16.mxu0 0
        %1129 = vmatpush2.bf16.msra.mxu0 0
        %1130 = vmatprep.subr.bf16.mxu0 0
        %1131 = vmatpush2.bf16.msra.mxu0 0
        %1132 = vmatprep.subr.bf16.mxu0 0
        %1133 = vmatpush2.bf16.msra.mxu0 0
        %1134 = vmatprep.subr.bf16.mxu0 0
        %1135 = vmatpush2.bf16.msra.mxu0 0
        %1136 = vmatprep.subr.bf16.mxu0 0
        %1137 = vmatpush2.bf16.msra.mxu0 0
        %1138 = vmatprep.subr.bf16.mxu0 0
        %1139 = vmatpush2.bf16.msra.mxu0 0
        %1140 = vmatprep.subr.bf16.mxu0 0
        %1141 = vmatpush2.bf16.msra.mxu0 0
        %1142 = vmatprep.subr.bf16.mxu0 0
        %1143 = vmatpush2.bf16.msra.mxu0 0
        %1144 = vmatprep.mubr.bf16.mxu0 0
        %1145 = vmatmul.mubr.bf16.gmra.mxu0 %v1104
        %v1146 = vpop.f32.mrf.mxu0
        %v1147 = vadd.f32 0.0, %v1146
        %v1148 = vpop.f32.mrf.mxu0
        %v1149 = vadd.f32 0.0, %v1148
        %v1150 = vpop.f32.mrf.mxu0
        %v1151 = vpop.f32.mrf.mxu0
        %1152 = vdwg.mxu0
        %v1153 = vadd.f32 %v1089, %v1147
        %v1154 = vadd.f32 %v1090, %v1149
        %s1155 = scalar_lea.vmem %s4, 16
        %v1156 = vld [vmem:[%s1155] sm:$0xf]
        %v1157 = vpack.c.bf16 %v902, %v902
        %v1158 = vpack.c.bf16 %v903, %v903
        %v1160 = vsel %vm298, %v1156, 0
        %v1163 = vsel %vm302, %v1157, 0
        %v1166 = vsel %vm302, %v1158, 0
        %1168 = vmatprep.subr.bf16.mxu0 0
        %1169 = vmatpush1.bf16.msra.mxu0 0
        %1170 = vmatprep.subr.bf16.mxu0 0
        %1171 = vmatpush1.bf16.msra.mxu0 0
        %1172 = vmatprep.subr.bf16.mxu0 0
        %1173 = vmatpush1.bf16.msra.mxu0 0
        %1174 = vmatprep.subr.bf16.mxu0 0
        %1175 = vmatpush1.bf16.msra.mxu0 0
        %1176 = vmatprep.subr.bf16.mxu0 0
        %1177 = vmatpush1.bf16.msra.mxu0 0
        %1178 = vmatprep.subr.bf16.mxu0 0
        %1179 = vmatpush1.bf16.msra.mxu0 0
        %1180 = vmatprep.subr.bf16.mxu0 0
        %1181 = vmatpush1.bf16.msra.mxu0 0
        %1182 = vmatprep.subr.bf16.mxu0 %v1166
        %1183 = vmatpush1.bf16.msra.mxu0 %v1163
        %1184 = vmatprep.subr.bf16.mxu0 0
        %1185 = vmatpush2.bf16.msra.mxu0 0
        %1186 = vmatprep.subr.bf16.mxu0 0
        %1187 = vmatpush2.bf16.msra.mxu0 0
        %1188 = vmatprep.subr.bf16.mxu0 0
        %1189 = vmatpush2.bf16.msra.mxu0 0
        %1190 = vmatprep.subr.bf16.mxu0 0
        %1191 = vmatpush2.bf16.msra.mxu0 0
        %1192 = vmatprep.subr.bf16.mxu0 0
        %1193 = vmatpush2.bf16.msra.mxu0 0
        %1194 = vmatprep.subr.bf16.mxu0 0
        %1195 = vmatpush2.bf16.msra.mxu0 0
        %1196 = vmatprep.subr.bf16.mxu0 0
        %1197 = vmatpush2.bf16.msra.mxu0 0
        %1198 = vmatprep.subr.bf16.mxu0 0
        %1199 = vmatpush2.bf16.msra.mxu0 0
        %1200 = vmatprep.mubr.bf16.mxu0 0
        %1201 = vmatmul.mubr.bf16.gmra.mxu0 %v1160
        %v1202 = vpop.f32.mrf.mxu0
        %v1203 = vadd.f32 0.0, %v1202
        %v1204 = vpop.f32.mrf.mxu0
        %v1205 = vadd.f32 0.0, %v1204
        %v1206 = vpop.f32.mrf.mxu0
        %v1207 = vpop.f32.mrf.mxu0
        %1208 = vdwg.mxu0
        %v1209 = vadd.f32 %v1153, %v1203
        %v1210 = vadd.f32 %v1154, %v1205
        %1211 = vrot.lane.b32.xlu0 %v902, 127
        %v1212 = vpop.permute.xlu0 %1211
        %1213 = vrot.lane.b32.xlu0 %v903, 127
        %v1214 = vpop.permute.xlu0 %1213
        %v1215 = vsel %vm606, %v1212, %v1214
        %v1216 = vsel %vm606, %v1214, %v1212
        %v1217 = vmul.f32 %v1215, %v612
        %v1218 = vmul.f32 %v1216, %v616
        %s1219 = scalar_lea.vmem %s4, 20
        %v1220 = vld [vmem:[%s1219] sm:$0xf]
        %v1221 = vpack.c.bf16 %v1217, %v1217
        %v1222 = vpack.c.bf16 %v1218, %v1218
        %v1224 = vsel %vm298, %v1220, 0
        %v1227 = vsel %vm302, %v1221, 0
        %v1230 = vsel %vm302, %v1222, 0
        %1232 = vmatprep.subr.bf16.mxu0 0
        %1233 = vmatpush1.bf16.msra.mxu0 0
        %1234 = vmatprep.subr.bf16.mxu0 0
        %1235 = vmatpush1.bf16.msra.mxu0 0
        %1236 = vmatprep.subr.bf16.mxu0 0
        %1237 = vmatpush1.bf16.msra.mxu0 0
        %1238 = vmatprep.subr.bf16.mxu0 0
        %1239 = vmatpush1.bf16.msra.mxu0 0
        %1240 = vmatprep.subr.bf16.mxu0 0
        %1241 = vmatpush1.bf16.msra.mxu0 0
        %1242 = vmatprep.subr.bf16.mxu0 0
        %1243 = vmatpush1.bf16.msra.mxu0 0
        %1244 = vmatprep.subr.bf16.mxu0 0
        %1245 = vmatpush1.bf16.msra.mxu0 0
        %1246 = vmatprep.subr.bf16.mxu0 %v1230
        %1247 = vmatpush1.bf16.msra.mxu0 %v1227
        %1248 = vmatprep.subr.bf16.mxu0 0
        %1249 = vmatpush2.bf16.msra.mxu0 0
        %1250 = vmatprep.subr.bf16.mxu0 0
        %1251 = vmatpush2.bf16.msra.mxu0 0
        %1252 = vmatprep.subr.bf16.mxu0 0
        %1253 = vmatpush2.bf16.msra.mxu0 0
        %1254 = vmatprep.subr.bf16.mxu0 0
        %1255 = vmatpush2.bf16.msra.mxu0 0
        %1256 = vmatprep.subr.bf16.mxu0 0
        %1257 = vmatpush2.bf16.msra.mxu0 0
        %1258 = vmatprep.subr.bf16.mxu0 0
        %1259 = vmatpush2.bf16.msra.mxu0 0
        %1260 = vmatprep.subr.bf16.mxu0 0
        %1261 = vmatpush2.bf16.msra.mxu0 0
        %1262 = vmatprep.subr.bf16.mxu0 0
        %1263 = vmatpush2.bf16.msra.mxu0 0
        %1264 = vmatprep.mubr.bf16.mxu0 0
        %1265 = vmatmul.mubr.bf16.gmra.mxu0 %v1224
        %v1266 = vpop.f32.mrf.mxu0
        %v1267 = vadd.f32 0.0, %v1266
        %v1268 = vpop.f32.mrf.mxu0
        %v1269 = vadd.f32 0.0, %v1268
        %v1270 = vpop.f32.mrf.mxu0
        %v1271 = vpop.f32.mrf.mxu0
        %1272 = vdwg.mxu0
        %v1273 = vadd.f32 %v1209, %v1267
        %v1274 = vadd.f32 %v1210, %v1269
        %1275 = vrot.lane.b32.xlu0 %v902, 113
        %v1276 = vpop.permute.xlu0 %1275
        %1277 = vrot.lane.b32.xlu0 %v903, 113
        %v1278 = vpop.permute.xlu0 %1277
        %v1279 = vsel %vm679, %v1276, %v1278
        %v1280 = vsel %vm679, %v1278, %v1276
        %v1281 = vmul.f32 %v1279, %v685
        %v1282 = vmul.f32 %v1280, %v689
        %s1283 = scalar_lea.vmem %s4, 24
        %v1284 = vld [vmem:[%s1283] sm:$0xf]
        %v1285 = vpack.c.bf16 %v1281, %v1281
        %v1286 = vpack.c.bf16 %v1282, %v1282
        %v1288 = vsel %vm298, %v1284, 0
        %v1291 = vsel %vm302, %v1285, 0
        %v1294 = vsel %vm302, %v1286, 0
        %1296 = vmatprep.subr.bf16.mxu0 0
        %1297 = vmatpush1.bf16.msra.mxu0 0
        %1298 = vmatprep.subr.bf16.mxu0 0
        %1299 = vmatpush1.bf16.msra.mxu0 0
        %1300 = vmatprep.subr.bf16.mxu0 0
        %1301 = vmatpush1.bf16.msra.mxu0 0
        %1302 = vmatprep.subr.bf16.mxu0 0
        %1303 = vmatpush1.bf16.msra.mxu0 0
        %1304 = vmatprep.subr.bf16.mxu0 0
        %1305 = vmatpush1.bf16.msra.mxu0 0
        %1306 = vmatprep.subr.bf16.mxu0 0
        %1307 = vmatpush1.bf16.msra.mxu0 0
        %1308 = vmatprep.subr.bf16.mxu0 0
        %1309 = vmatpush1.bf16.msra.mxu0 0
        %1310 = vmatprep.subr.bf16.mxu0 %v1294
        %1311 = vmatpush1.bf16.msra.mxu0 %v1291
        %1312 = vmatprep.subr.bf16.mxu0 0
        %1313 = vmatpush2.bf16.msra.mxu0 0
        %1314 = vmatprep.subr.bf16.mxu0 0
        %1315 = vmatpush2.bf16.msra.mxu0 0
        %1316 = vmatprep.subr.bf16.mxu0 0
        %1317 = vmatpush2.bf16.msra.mxu0 0
        %1318 = vmatprep.subr.bf16.mxu0 0
        %1319 = vmatpush2.bf16.msra.mxu0 0
        %1320 = vmatprep.subr.bf16.mxu0 0
        %1321 = vmatpush2.bf16.msra.mxu0 0
        %1322 = vmatprep.subr.bf16.mxu0 0
        %1323 = vmatpush2.bf16.msra.mxu0 0
        %1324 = vmatprep.subr.bf16.mxu0 0
        %1325 = vmatpush2.bf16.msra.mxu0 0
        %1326 = vmatprep.subr.bf16.mxu0 0
        %1327 = vmatpush2.bf16.msra.mxu0 0
        %1328 = vmatprep.mubr.bf16.mxu0 0
        %1329 = vmatmul.mubr.bf16.gmra.mxu0 %v1288
        %v1330 = vpop.f32.mrf.mxu0
        %v1331 = vadd.f32 0.0, %v1330
        %v1332 = vpop.f32.mrf.mxu0
        %v1333 = vadd.f32 0.0, %v1332
        %v1334 = vpop.f32.mrf.mxu0
        %v1335 = vpop.f32.mrf.mxu0
        %1336 = vdwg.mxu0
        %v1337 = vadd.f32 %v1273, %v1331
        %v1338 = vadd.f32 %v1274, %v1333
        %1339 = vrot.lane.b32.xlu0 %v902, 112
        %v1340 = vpop.permute.xlu0 %1339
        %1341 = vrot.lane.b32.xlu0 %v903, 112
        %v1342 = vpop.permute.xlu0 %1341
        %v1343 = vsel %vm752, %v1340, %v1342
        %v1344 = vsel %vm752, %v1342, %v1340
        %v1345 = vmul.f32 %v1343, %v758
        %v1346 = vmul.f32 %v1344, %v762
        %s1347 = scalar_lea.vmem %s4, 28
        %v1348 = vld [vmem:[%s1347] sm:$0xf]
        %v1349 = vpack.c.bf16 %v1345, %v1345
        %v1350 = vpack.c.bf16 %v1346, %v1346
        %v1352 = vsel %vm298, %v1348, 0
        %v1355 = vsel %vm302, %v1349, 0
        %v1358 = vsel %vm302, %v1350, 0
        %1360 = vmatprep.subr.bf16.mxu0 0
        %1361 = vmatpush1.bf16.msra.mxu0 0
        %1362 = vmatprep.subr.bf16.mxu0 0
        %1363 = vmatpush1.bf16.msra.mxu0 0
        %1364 = vmatprep.subr.bf16.mxu0 0
        %1365 = vmatpush1.bf16.msra.mxu0 0
        %1366 = vmatprep.subr.bf16.mxu0 0
        %1367 = vmatpush1.bf16.msra.mxu0 0
        %1368 = vmatprep.subr.bf16.mxu0 0
        %1369 = vmatpush1.bf16.msra.mxu0 0
        %1370 = vmatprep.subr.bf16.mxu0 0
        %1371 = vmatpush1.bf16.msra.mxu0 0
        %1372 = vmatprep.subr.bf16.mxu0 0
        %1373 = vmatpush1.bf16.msra.mxu0 0
        %1374 = vmatprep.subr.bf16.mxu0 %v1358
        %1375 = vmatpush1.bf16.msra.mxu0 %v1355
        %1376 = vmatprep.subr.bf16.mxu0 0
        %1377 = vmatpush2.bf16.msra.mxu0 0
        %1378 = vmatprep.subr.bf16.mxu0 0
        %1379 = vmatpush2.bf16.msra.mxu0 0
        %1380 = vmatprep.subr.bf16.mxu0 0
        %1381 = vmatpush2.bf16.msra.mxu0 0
        %1382 = vmatprep.subr.bf16.mxu0 0
        %1383 = vmatpush2.bf16.msra.mxu0 0
        %1384 = vmatprep.subr.bf16.mxu0 0
        %1385 = vmatpush2.bf16.msra.mxu0 0
        %1386 = vmatprep.subr.bf16.mxu0 0
        %1387 = vmatpush2.bf16.msra.mxu0 0
        %1388 = vmatprep.subr.bf16.mxu0 0
        %1389 = vmatpush2.bf16.msra.mxu0 0
        %1390 = vmatprep.subr.bf16.mxu0 0
        %1391 = vmatpush2.bf16.msra.mxu0 0
        %1392 = vmatprep.mubr.bf16.mxu0 0
        %1393 = vmatmul.mubr.bf16.gmra.mxu0 %v1352
        %v1394 = vpop.f32.mrf.mxu0
        %v1395 = vadd.f32 0.0, %v1394
        %v1396 = vpop.f32.mrf.mxu0
        %v1397 = vadd.f32 0.0, %v1396
        %v1398 = vpop.f32.mrf.mxu0
        %v1399 = vpop.f32.mrf.mxu0
        %1400 = vdwg.mxu0
        %v1401 = vadd.f32 %v1337, %v1395
        %v1402 = vadd.f32 %v1338, %v1397
        %1403 = vrot.lane.b32.xlu0 %v902, 111
        %v1404 = vpop.permute.xlu0 %1403
        %1405 = vrot.lane.b32.xlu0 %v903, 111
        %v1406 = vpop.permute.xlu0 %1405
        %v1407 = vsel %vm825, %v1404, %v1406
        %v1408 = vsel %vm825, %v1406, %v1404
        %v1409 = vmul.f32 %v1407, %v831
        %v1410 = vmul.f32 %v1408, %v835
        %s1411 = scalar_lea.vmem %s4, 32
        %v1412 = vld [vmem:[%s1411] sm:$0xf]
        %v1413 = vpack.c.bf16 %v1409, %v1409
        %v1414 = vpack.c.bf16 %v1410, %v1410
        %v1416 = vsel %vm298, %v1412, 0
        %v1419 = vsel %vm302, %v1413, 0
        %v1422 = vsel %vm302, %v1414, 0
        %1424 = vmatprep.subr.bf16.mxu0 0
        %1425 = vmatpush1.bf16.msra.mxu0 0
        %1426 = vmatprep.subr.bf16.mxu0 0
        %1427 = vmatpush1.bf16.msra.mxu0 0
        %1428 = vmatprep.subr.bf16.mxu0 0
        %1429 = vmatpush1.bf16.msra.mxu0 0
        %1430 = vmatprep.subr.bf16.mxu0 0
        %1431 = vmatpush1.bf16.msra.mxu0 0
        %1432 = vmatprep.subr.bf16.mxu0 0
        %1433 = vmatpush1.bf16.msra.mxu0 0
        %1434 = vmatprep.subr.bf16.mxu0 0
        %1435 = vmatpush1.bf16.msra.mxu0 0
        %1436 = vmatprep.subr.bf16.mxu0 0
        %1437 = vmatpush1.bf16.msra.mxu0 0
        %1438 = vmatprep.subr.bf16.mxu0 %v1422
        %1439 = vmatpush1.bf16.msra.mxu0 %v1419
        %1440 = vmatprep.subr.bf16.mxu0 0
        %1441 = vmatpush2.bf16.msra.mxu0 0
        %1442 = vmatprep.subr.bf16.mxu0 0
        %1443 = vmatpush2.bf16.msra.mxu0 0
        %1444 = vmatprep.subr.bf16.mxu0 0
        %1445 = vmatpush2.bf16.msra.mxu0 0
        %1446 = vmatprep.subr.bf16.mxu0 0
        %1447 = vmatpush2.bf16.msra.mxu0 0
        %1448 = vmatprep.subr.bf16.mxu0 0
        %1449 = vmatpush2.bf16.msra.mxu0 0
        %1450 = vmatprep.subr.bf16.mxu0 0
        %1451 = vmatpush2.bf16.msra.mxu0 0
        %1452 = vmatprep.subr.bf16.mxu0 0
        %1453 = vmatpush2.bf16.msra.mxu0 0
        %1454 = vmatprep.subr.bf16.mxu0 0
        %1455 = vmatpush2.bf16.msra.mxu0 0
        %1456 = vmatprep.mubr.bf16.mxu0 0
        %1457 = vmatmul.mubr.bf16.gmra.mxu0 %v1416
        %v1458 = vpop.f32.mrf.mxu0
        %v1459 = vadd.f32 0.0, %v1458
        %v1460 = vpop.f32.mrf.mxu0
        %v1461 = vadd.f32 0.0, %v1460
        %v1462 = vpop.f32.mrf.mxu0
        %v1463 = vpop.f32.mrf.mxu0
        %1464 = vdwg.mxu0
        %v1465 = vadd.f32 %v1401, %v1459
        %v1466 = vadd.f32 %v1402, %v1461
        %v1467 = vld [vmem:[%s5] sm:$0xff]
        %1469 = vset.pattern.permute.xlu0 0
        %1470 = vperm.xlu0 %1469, %v1467
        %v1471 = vpop.permute.xlu0 %1470
        %v1473 = vadd.f32 %v1465, %v1471
        %v1474 = vadd.f32 %v1466, %v1471
        %v1475 = vadd.f32 %v251, %v1473
        %v1476 = vadd.f32 %v252, %v1474
        %1477 = vst [vmem:[%s244] sm:$0xff] %v1475
        %1478 = vst [vmem:[%s244 + $0x8] sm:$0xff] %v1476
        %s1479 = sand.u32 %s159, 1
        %s1480 = scalar_lea.sflag [#allocation3], %s1479
        %s1481 = sand.u32 %s159, 1
        %s1482 = smul.addr %s1481, 16
        %s1483 = scalar_lea.vmem [#allocation2], %s1482
        // Predicated region
        $region45: #{tpu_custom_call.1} parent=43 // pred_check
          %p1484 = pneg %p169
        $region46: #{tpu_custom_call.1} parent=43 // pred_check_branch
          %1486 = sbr.rel (%p1484) target = $region48
        $region47: #{tpu_custom_call.1} parent=43 // pred_region
          %s1488 = ssub.s32 256, 256
          %1489 = vsyncadd %s1480, %s1488
          %s1490 = smul.addr %s20, 2
          %s1491 = smul.addr %s1490, 128
          %s1492 = scalar_lea.hbm %s6, %s1491
          %s1494 = sshll.u32 %s1483, 4
          %s1495 = int_to_ptr.vmem [resolvable:$true] %s1494
          %1497 = dma.vmem_to_hbm [thread:$0]  %s1495, 256, %s1492, %s1480
        $region48: #{tpu_custom_call.1} parent=43 // pred_fallthru
          _
      $region44: #{tpu_custom_call.1} parent=5 // pred_fallthru
        _
      %p1498 = scmp.le.s32.totalorder 2, %s15
      // Predicated region
      $region49: #{tpu_custom_call.1} parent=5 // pred_check
        %p1499 = pneg %p1498
      $region50: #{tpu_custom_call.1} parent=5 // pred_check_branch
        %1501 = sbr.rel (%p1499) target = $region52
      $region51: #{tpu_custom_call.1} parent=5 // pred_region
        %s1502 = ssub.s32 %s15, 2
        // Predicated region
        $region53: #{tpu_custom_call.1} parent=51 // pred_check
          %p1503 = pneg %p175
        $region54: #{tpu_custom_call.1} parent=51 // pred_check_branch
          %1505 = sbr.rel (%p1503) target = $region56
        $region55: #{tpu_custom_call.1} parent=51 // pred_region
          %s1506 = sand.u32 %s160, 1
          %s1507 = scalar_lea.sflag [#allocation3], %s1506
          %s1508 = sand.u32 %s160, 1
          %s1509 = smul.addr %s1508, 16
          %s1510 = scalar_lea.vmem [#allocation2], %s1509
          %1511 = dma.done %s1507, 256
        $region56: #{tpu_custom_call.1} parent=51 // pred_fallthru
          _
      $region52: #{tpu_custom_call.1} parent=5 // pred_fallthru
        _
    $region6: #{tpu_custom_call.1} parent=1 // loop_footer
      %s19 = sadd.s32 1, %s15
    $region7: #{tpu_custom_call.1} parent=1 // loop_footer_branch
      %14 = sbr.rel target = $region3
    $region8: #{tpu_custom_call.1} parent=1 // loop_exit
      _
    %1512 = vsyncpa [#allocation3], 1
    %s1513 = scalar_lea.sflag [#allocation3], 1
    %1514 = vsyncpa %s1513, 1

</llo_original>
